<compile_context>
chip_gen: v7x
topology: tpu7x:2x2x1
jax: 0.10.0
libtpu: 0.0.40
codegen_flags: <defaults>
</compile_context>

<pallas_src>
import functools

import jax
import jax.numpy as jnp
import numpy as np
from jax.experimental import pallas as pl
from jax.experimental.pallas import tpu as pltpu

EPS = 1e-5  # nn.InstanceNorm2d default eps


def _resnet_block_kernel(x_ref, w1_ref, w2_ref, o_ref, *, h, w):
    """One batch element: x -> conv3x3/IN/ReLU -> conv3x3/IN -> +x."""
    C = x_ref.shape[1]
    hw = h * w
    hpw = (h + 2) * w

    xf = x_ref[0].astype(jnp.float32)                      # (C, HW) lane-dense

    # Column index of every flattened position (for reflect handling at w edges).
    w_idx = jax.lax.broadcasted_iota(jnp.int32, (C, hpw), 1) % w
    is_w_first = w_idx == 0
    is_w_last = w_idx == (w - 1)

    def conv3x3_reflect(z, w_ref):
        # Reflect-pad rows in flattened (C, H*W) form: padded rows = [1, 0..H-1, H-2].
        zr = jnp.concatenate(
            [z[:, w:2 * w], z, z[:, hw - 2 * w:hw - w]], axis=1)   # (C, (H+2)*W)
        # Column-shifted variants with reflect at the w boundaries.
        # jnp.roll lowers to slice+concat on the lane axis; the wrapped positions
        # (p=0 / p=n-1) are never selected thanks to the boundary masks below.
        r_m = jnp.roll(zr, 1, axis=1)      # value at p-1
        r_p = jnp.roll(zr, -1, axis=1)     # value at p+1
        left = jnp.where(is_w_first, r_p, r_m)   # x[.., w-1], reflect at w=0
        right = jnp.where(is_w_last, r_m, r_p)   # x[.., w+1], reflect at w=W-1
        shifted = (left, zr, right)              # indexed by kw = 0, 1, 2

        # 9 tap matmuls accumulated in f32 (no im2col materialization).
        acc = jnp.zeros((C, hw), jnp.float32)
        for kh in range(3):
            for kw in range(3):
                tap = shifted[kw][:, kh * w:kh * w + hw]           # (C, HW)
                acc = acc + jnp.dot(w_ref[kh, kw], tap,
                                    preferred_element_type=jnp.float32)
        return acc

    def instance_norm(y):
        # One-pass biased stats (matches InstanceNorm2d affine=False).
        inv_hw = 1.0 / hw
        mean = jnp.sum(y, axis=1, keepdims=True) * inv_hw
        ex2 = jnp.sum(y * y, axis=1, keepdims=True) * inv_hw
        var = ex2 - mean * mean
        return (y - mean) * jax.lax.rsqrt(var + EPS)

    y = conv3x3_reflect(xf, w1_ref)
    y = jnp.maximum(instance_norm(y), 0.0)     # conv1 -> IN -> ReLU
    # TODO(synk): use_dropout=False chosen; nn.Dropout(0.5) (train-mode RNG) not implemented.
    y = conv3x3_reflect(y, w2_ref)
    y = instance_norm(y)                       # conv2 -> IN
    o_ref[0] = (xf + y).astype(o_ref.dtype)    # residual add


def resnet_block(x, w1, b1, w2, b2):
    """out = x + IN(conv2(pad(ReLU(IN(conv1(pad(x)))))))  (padding_type='reflect')."""
    # b1/b2 accepted for API parity with Conv2d(bias=True) but unused in the kernel:
    # the bias cancels exactly under the following InstanceNorm (affine=False).
    del b1, b2
    N, C, h, w = x.shape
    hw = h * w

    x_flat = x.reshape(N, C, hw)                           # lane-dense activation slab
    # (Cout, Cin, kh, kw) -> (kh, kw, Cout, Cin): one (C, C) tap per (kh, kw).
    w1_t = jnp.transpose(w1, (2, 3, 0, 1))
    w2_t = jnp.transpose(w2, (2, 3, 0, 1))

    kern = functools.partial(_resnet_block_kernel, h=h, w=w)
    out = pl.pallas_call(
        kern,
        out_shape=jax.ShapeDtypeStruct((N, C, hw), x.dtype),
        grid_spec=pltpu.PrefetchScalarGridSpec(
            num_scalar_prefetch=0,
            grid=(N,),
            in_specs=[
                pl.BlockSpec((1, C, hw), lambda n: (n, 0, 0)),
                pl.BlockSpec((3, 3, C, C), lambda n: (0, 0, 0, 0)),
                pl.BlockSpec((3, 3, C, C), lambda n: (0, 0, 0, 0)),
            ],
            out_specs=pl.BlockSpec((1, C, hw), lambda n: (n, 0, 0)),
        ),
        compiler_params=pltpu.CompilerParams(
            dimension_semantics=("parallel",),
            vmem_limit_bytes=64 * 1024 * 1024,
        ),
    )(x_flat, w1_t, w2_t)
    return out.reshape(N, C, h, w)


def _reference(x, w1, b1, w2, b2):
    """Pure-JAX reference of the PyTorch forward (reflect pad / InstanceNorm2d affine=False)."""
    def conv(z, wt, b):
        zp = jnp.pad(z, ((0, 0), (0, 0), (1, 1), (1, 1)), mode="reflect")
        y = jax.lax.conv_general_dilated(
            zp, wt, (1, 1), "VALID", dimension_numbers=("NCHW", "OIHW", "NCHW"))
        return y + b[None, :, None, None]

    def inorm(y):
        m = y.mean(axis=(2, 3), keepdims=True)
        v = ((y - m) ** 2).mean(axis=(2, 3), keepdims=True)
        return (y - m) * jax.lax.rsqrt(v + EPS)

    y = jnp.maximum(inorm(conv(x, w1, b1)), 0.0)
    y = inorm(conv(y, w2, b2))
    return x + y


if __name__ == "__main__":
    # Module config: dim=4, padding_type='reflect', norm_layer=InstanceNorm2d(affine=False),
    # use_dropout=False, use_bias=True.
    DIM, N, H, W = 4, 2, 16, 16

    key = jax.random.PRNGKey(0)
    kx, kw1, kb1, kw2, kb2 = jax.random.split(key, 5)
    x = jax.random.normal(kx, (N, DIM, H, W), dtype=jnp.float32)
    w1 = 0.1 * jax.random.normal(kw1, (DIM, DIM, 3, 3), dtype=jnp.float32)
    b1 = 0.1 * jax.random.normal(kb1, (DIM,), dtype=jnp.float32)
    w2 = 0.1 * jax.random.normal(kw2, (DIM, DIM, 3, 3), dtype=jnp.float32)
    b2 = 0.1 * jax.random.normal(kb2, (DIM,), dtype=jnp.float32)

    out = jax.block_until_ready(resnet_block(x, w1, b1, w2, b2))
    ref = jax.block_until_ready(_reference(x, w1, b1, w2, b2))
    np.testing.assert_allclose(np.asarray(out), np.asarray(ref), rtol=1e-4, atol=1e-4)

    print("KERNEL_OK")
</pallas_src>

<mosaic_0001>
module attributes {stable_mosaic.version = 11 : i64} {
  func.func @_resnet_block_kernel(%arg0: i32, %arg1: memref<1x4x256xf32, #tpu.memory_space<vmem>>, %arg2: memref<3x3x4x4xf32, #tpu.memory_space<vmem>>, %arg3: memref<3x3x4x4xf32, #tpu.memory_space<vmem>>, %arg4: memref<1x4x256xf32, #tpu.memory_space<vmem>>) attributes {dimension_semantics = [#tpu.dimension_semantics<parallel>], iteration_bounds = array<i64: 2>, scalar_prefetch = 0 : i64, scratch_operands = 0 : i64, tpu.core_type = #tpu.core_type<tc>, window_params = [{transform_indices = @transform_0, window_bounds = array<i64: 1, 4, 256>}, {pipeline_mode = #tpu.pipeline_mode<synchronous>, transform_indices = @transform_1, window_bounds = array<i64: 3, 3, 4, 4>}, {pipeline_mode = #tpu.pipeline_mode<synchronous>, transform_indices = @transform_2, window_bounds = array<i64: 3, 3, 4, 4>}, {transform_indices = @transform_3, window_bounds = array<i64: 1, 4, 256>}]} {
    %c0 = arith.constant 0 : index
    %c0_0 = arith.constant 0 : index
    %c0_1 = arith.constant 0 : index
    %0 = vector.load %arg1[%c0, %c0_0, %c0_1] : memref<1x4x256xf32, #tpu.memory_space<vmem>>, vector<1x4x256xf32>
    %1 = vector.shape_cast %0 : vector<1x4x256xf32> to vector<4x256xf32>
    %2 = tpu.iota {dimensions = array<i32: 1>} : vector<4x288xi32>
    %c16_i32 = arith.constant 16 : i32
    %c0_i32 = arith.constant 0 : i32
    %3 = arith.cmpi eq, %c16_i32, %c0_i32 : i32
    %c1_i32 = arith.constant 1 : i32
    %4 = arith.select %3, %c1_i32, %c16_i32 : i32
    %5 = vector.broadcast %4 : i32 to vector<4x288xi32>
    %6 = arith.remsi %2, %5 : vector<4x288xi32>
    %c0_i32_2 = arith.constant 0 : i32
    %7 = vector.broadcast %c0_i32_2 : i32 to vector<4x288xi32>
    %8 = arith.cmpi ne, %6, %7 : vector<4x288xi32>
    %c0_i32_3 = arith.constant 0 : i32
    %9 = vector.broadcast %c0_i32_3 : i32 to vector<4x288xi32>
    %10 = arith.cmpi slt, %6, %9 : vector<4x288xi32>
    %c0_i32_4 = arith.constant 0 : i32
    %11 = arith.cmpi slt, %4, %c0_i32_4 : i32
    %12 = vector.broadcast %11 : i1 to vector<4x288xi1>
    %13 = vector.broadcast %12 : vector<4x288xi1> to vector<4x288xi1>
    %14 = arith.xori %10, %13 : vector<4x288xi1>
    %15 = arith.andi %14, %8 : vector<4x288xi1>
    %16 = vector.broadcast %4 : i32 to vector<4x288xi32>
    %17 = arith.addi %6, %16 : vector<4x288xi32>
    %18 = arith.select %15, %17, %6 : vector<4x288xi1>, vector<4x288xi32>
    %c0_i32_5 = arith.constant 0 : i32
    %19 = vector.broadcast %c0_i32_5 : i32 to vector<4x288xi32>
    %20 = arith.cmpi eq, %18, %19 : vector<4x288xi32>
    %c15_i32 = arith.constant 15 : i32
    %21 = vector.broadcast %c15_i32 : i32 to vector<4x288xi32>
    %22 = arith.cmpi eq, %18, %21 : vector<4x288xi32>
    %23 = vector.extract_strided_slice %1 {offsets = [0, 16], sizes = [4, 16], strides = [1, 1]} : vector<4x256xf32> to vector<4x16xf32>
    %24 = vector.extract_strided_slice %1 {offsets = [0, 224], sizes = [4, 16], strides = [1, 1]} : vector<4x256xf32> to vector<4x16xf32>
    %25 = tpu.concatenate %23, %1, %24 in 1 : vector<4x16xf32>, vector<4x256xf32>, vector<4x16xf32> -> vector<4x288xf32>
    %26 = vector.extract_strided_slice %25 {offsets = [0, 287], sizes = [4, 1], strides = [1, 1]} : vector<4x288xf32> to vector<4x1xf32>
    %27 = vector.extract_strided_slice %25 {offsets = [0, 0], sizes = [4, 287], strides = [1, 1]} : vector<4x288xf32> to vector<4x287xf32>
    %28 = tpu.concatenate %26, %27 in 1 : vector<4x1xf32>, vector<4x287xf32> -> vector<4x288xf32>
    %29 = vector.extract_strided_slice %25 {offsets = [0, 1], sizes = [4, 287], strides = [1, 1]} : vector<4x288xf32> to vector<4x287xf32>
    %30 = vector.extract_strided_slice %25 {offsets = [0, 0], sizes = [4, 1], strides = [1, 1]} : vector<4x288xf32> to vector<4x1xf32>
    %31 = tpu.concatenate %29, %30 in 1 : vector<4x287xf32>, vector<4x1xf32> -> vector<4x288xf32>
    %32 = arith.select %20, %31, %28 : vector<4x288xi1>, vector<4x288xf32>
    %33 = arith.select %22, %28, %31 : vector<4x288xi1>, vector<4x288xf32>
    %cst = arith.constant 0.000000e+00 : f32
    %34 = vector.broadcast %cst : f32 to vector<4x256xf32>
    %35 = vector.extract_strided_slice %32 {offsets = [0, 0], sizes = [4, 256], strides = [1, 1]} : vector<4x288xf32> to vector<4x256xf32>
    %c0_6 = arith.constant 0 : index
    %c0_7 = arith.constant 0 : index
    %c0_8 = arith.constant 0 : index
    %c0_9 = arith.constant 0 : index
    %36 = vector.load %arg2[%c0_6, %c0_7, %c0_8, %c0_9] : memref<3x3x4x4xf32, #tpu.memory_space<vmem>>, vector<1x1x4x4xf32>
    %37 = vector.shape_cast %36 : vector<1x1x4x4xf32> to vector<4x4xf32>
    %cst_10 = arith.constant dense<0.000000e+00> : vector<4x256xf32>
    %38 = tpu.matmul %37, %35, %cst_10 {dimension_numbers = #tpu.dot_dimension_numbers<[1], [0], [0], [1], [0, 0, 1, 1], [], []>} : vector<4x4xf32>, vector<4x256xf32>, vector<4x256xf32> -> vector<4x256xf32>
    %39 = arith.addf %34, %38 : vector<4x256xf32>
    %40 = vector.extract_strided_slice %25 {offsets = [0, 0], sizes = [4, 256], strides = [1, 1]} : vector<4x288xf32> to vector<4x256xf32>
    %c0_11 = arith.constant 0 : index
    %c1 = arith.constant 1 : index
    %c0_12 = arith.constant 0 : index
    %c0_13 = arith.constant 0 : index
    %41 = vector.load %arg2[%c0_11, %c1, %c0_12, %c0_13] : memref<3x3x4x4xf32, #tpu.memory_space<vmem>>, vector<1x1x4x4xf32>
    %42 = vector.shape_cast %41 : vector<1x1x4x4xf32> to vector<4x4xf32>
    %cst_14 = arith.constant dense<0.000000e+00> : vector<4x256xf32>
    %43 = tpu.matmul %42, %40, %cst_14 {dimension_numbers = #tpu.dot_dimension_numbers<[1], [0], [0], [1], [0, 0, 1, 1], [], []>} : vector<4x4xf32>, vector<4x256xf32>, vector<4x256xf32> -> vector<4x256xf32>
    %44 = arith.addf %39, %43 : vector<4x256xf32>
    %45 = vector.extract_strided_slice %33 {offsets = [0, 0], sizes = [4, 256], strides = [1, 1]} : vector<4x288xf32> to vector<4x256xf32>
    %c0_15 = arith.constant 0 : index
    %c2 = arith.constant 2 : index
    %c0_16 = arith.constant 0 : index
    %c0_17 = arith.constant 0 : index
    %46 = vector.load %arg2[%c0_15, %c2, %c0_16, %c0_17] : memref<3x3x4x4xf32, #tpu.memory_space<vmem>>, vector<1x1x4x4xf32>
    %47 = vector.shape_cast %46 : vector<1x1x4x4xf32> to vector<4x4xf32>
    %cst_18 = arith.constant dense<0.000000e+00> : vector<4x256xf32>
    %48 = tpu.matmul %47, %45, %cst_18 {dimension_numbers = #tpu.dot_dimension_numbers<[1], [0], [0], [1], [0, 0, 1, 1], [], []>} : vector<4x4xf32>, vector<4x256xf32>, vector<4x256xf32> -> vector<4x256xf32>
    %49 = arith.addf %44, %48 : vector<4x256xf32>
    %50 = vector.extract_strided_slice %32 {offsets = [0, 16], sizes = [4, 256], strides = [1, 1]} : vector<4x288xf32> to vector<4x256xf32>
    %c1_19 = arith.constant 1 : index
    %c0_20 = arith.constant 0 : index
    %c0_21 = arith.constant 0 : index
    %c0_22 = arith.constant 0 : index
    %51 = vector.load %arg2[%c1_19, %c0_20, %c0_21, %c0_22] : memref<3x3x4x4xf32, #tpu.memory_space<vmem>>, vector<1x1x4x4xf32>
    %52 = vector.shape_cast %51 : vector<1x1x4x4xf32> to vector<4x4xf32>
    %cst_23 = arith.constant dense<0.000000e+00> : vector<4x256xf32>
    %53 = tpu.matmul %52, %50, %cst_23 {dimension_numbers = #tpu.dot_dimension_numbers<[1], [0], [0], [1], [0, 0, 1, 1], [], []>} : vector<4x4xf32>, vector<4x256xf32>, vector<4x256xf32> -> vector<4x256xf32>
    %54 = arith.addf %49, %53 : vector<4x256xf32>
    %55 = vector.extract_strided_slice %25 {offsets = [0, 16], sizes = [4, 256], strides = [1, 1]} : vector<4x288xf32> to vector<4x256xf32>
    %c1_24 = arith.constant 1 : index
    %c1_25 = arith.constant 1 : index
    %c0_26 = arith.constant 0 : index
    %c0_27 = arith.constant 0 : index
    %56 = vector.load %arg2[%c1_24, %c1_25, %c0_26, %c0_27] : memref<3x3x4x4xf32, #tpu.memory_space<vmem>>, vector<1x1x4x4xf32>
    %57 = vector.shape_cast %56 : vector<1x1x4x4xf32> to vector<4x4xf32>
    %cst_28 = arith.constant dense<0.000000e+00> : vector<4x256xf32>
    %58 = tpu.matmul %57, %55, %cst_28 {dimension_numbers = #tpu.dot_dimension_numbers<[1], [0], [0], [1], [0, 0, 1, 1], [], []>} : vector<4x4xf32>, vector<4x256xf32>, vector<4x256xf32> -> vector<4x256xf32>
    %59 = arith.addf %54, %58 : vector<4x256xf32>
    %60 = vector.extract_strided_slice %33 {offsets = [0, 16], sizes = [4, 256], strides = [1, 1]} : vector<4x288xf32> to vector<4x256xf32>
    %c1_29 = arith.constant 1 : index
    %c2_30 = arith.constant 2 : index
    %c0_31 = arith.constant 0 : index
    %c0_32 = arith.constant 0 : index
    %61 = vector.load %arg2[%c1_29, %c2_30, %c0_31, %c0_32] : memref<3x3x4x4xf32, #tpu.memory_space<vmem>>, vector<1x1x4x4xf32>
    %62 = vector.shape_cast %61 : vector<1x1x4x4xf32> to vector<4x4xf32>
    %cst_33 = arith.constant dense<0.000000e+00> : vector<4x256xf32>
    %63 = tpu.matmul %62, %60, %cst_33 {dimension_numbers = #tpu.dot_dimension_numbers<[1], [0], [0], [1], [0, 0, 1, 1], [], []>} : vector<4x4xf32>, vector<4x256xf32>, vector<4x256xf32> -> vector<4x256xf32>
    %64 = arith.addf %59, %63 : vector<4x256xf32>
    %65 = vector.extract_strided_slice %32 {offsets = [0, 32], sizes = [4, 256], strides = [1, 1]} : vector<4x288xf32> to vector<4x256xf32>
    %c2_34 = arith.constant 2 : index
    %c0_35 = arith.constant 0 : index
    %c0_36 = arith.constant 0 : index
    %c0_37 = arith.constant 0 : index
    %66 = vector.load %arg2[%c2_34, %c0_35, %c0_36, %c0_37] : memref<3x3x4x4xf32, #tpu.memory_space<vmem>>, vector<1x1x4x4xf32>
    %67 = vector.shape_cast %66 : vector<1x1x4x4xf32> to vector<4x4xf32>
    %cst_38 = arith.constant dense<0.000000e+00> : vector<4x256xf32>
    %68 = tpu.matmul %67, %65, %cst_38 {dimension_numbers = #tpu.dot_dimension_numbers<[1], [0], [0], [1], [0, 0, 1, 1], [], []>} : vector<4x4xf32>, vector<4x256xf32>, vector<4x256xf32> -> vector<4x256xf32>
    %69 = arith.addf %64, %68 : vector<4x256xf32>
    %70 = vector.extract_strided_slice %25 {offsets = [0, 32], sizes = [4, 256], strides = [1, 1]} : vector<4x288xf32> to vector<4x256xf32>
    %c2_39 = arith.constant 2 : index
    %c1_40 = arith.constant 1 : index
    %c0_41 = arith.constant 0 : index
    %c0_42 = arith.constant 0 : index
    %71 = vector.load %arg2[%c2_39, %c1_40, %c0_41, %c0_42] : memref<3x3x4x4xf32, #tpu.memory_space<vmem>>, vector<1x1x4x4xf32>
    %72 = vector.shape_cast %71 : vector<1x1x4x4xf32> to vector<4x4xf32>
    %cst_43 = arith.constant dense<0.000000e+00> : vector<4x256xf32>
    %73 = tpu.matmul %72, %70, %cst_43 {dimension_numbers = #tpu.dot_dimension_numbers<[1], [0], [0], [1], [0, 0, 1, 1], [], []>} : vector<4x4xf32>, vector<4x256xf32>, vector<4x256xf32> -> vector<4x256xf32>
    %74 = arith.addf %69, %73 : vector<4x256xf32>
    %75 = vector.extract_strided_slice %33 {offsets = [0, 32], sizes = [4, 256], strides = [1, 1]} : vector<4x288xf32> to vector<4x256xf32>
    %c2_44 = arith.constant 2 : index
    %c2_45 = arith.constant 2 : index
    %c0_46 = arith.constant 0 : index
    %c0_47 = arith.constant 0 : index
    %76 = vector.load %arg2[%c2_44, %c2_45, %c0_46, %c0_47] : memref<3x3x4x4xf32, #tpu.memory_space<vmem>>, vector<1x1x4x4xf32>
    %77 = vector.shape_cast %76 : vector<1x1x4x4xf32> to vector<4x4xf32>
    %cst_48 = arith.constant dense<0.000000e+00> : vector<4x256xf32>
    %78 = tpu.matmul %77, %75, %cst_48 {dimension_numbers = #tpu.dot_dimension_numbers<[1], [0], [0], [1], [0, 0, 1, 1], [], []>} : vector<4x4xf32>, vector<4x256xf32>, vector<4x256xf32> -> vector<4x256xf32>
    %79 = arith.addf %74, %78 : vector<4x256xf32>
    %cst_49 = arith.constant dense<0.000000e+00> : vector<4xf32>
    %80 = vector.multi_reduction <add>, %79, %cst_49 [1] : vector<4x256xf32> to vector<4xf32>
    %81 = vector.shape_cast %80 : vector<4xf32> to vector<4x1xf32>
    %cst_50 = arith.constant 3.906250e-03 : f32
    %82 = vector.broadcast %cst_50 : f32 to vector<4x1xf32>
    %83 = arith.mulf %81, %82 : vector<4x1xf32>
    %84 = arith.mulf %79, %79 : vector<4x256xf32>
    %cst_51 = arith.constant dense<0.000000e+00> : vector<4xf32>
    %85 = vector.multi_reduction <add>, %84, %cst_51 [1] : vector<4x256xf32> to vector<4xf32>
    %86 = vector.shape_cast %85 : vector<4xf32> to vector<4x1xf32>
    %cst_52 = arith.constant 3.906250e-03 : f32
    %87 = vector.broadcast %cst_52 : f32 to vector<4x1xf32>
    %88 = arith.mulf %86, %87 : vector<4x1xf32>
    %89 = arith.mulf %83, %83 : vector<4x1xf32>
    %90 = arith.subf %88, %89 : vector<4x1xf32>
    %91 = vector.broadcast %83 : vector<4x1xf32> to vector<4x256xf32>
    %92 = arith.subf %79, %91 : vector<4x256xf32>
    %cst_53 = arith.constant 9.99999974E-6 : f32
    %93 = vector.broadcast %cst_53 : f32 to vector<4x1xf32>
    %94 = arith.addf %90, %93 : vector<4x1xf32>
    %95 = math.rsqrt %94 : vector<4x1xf32>
    %96 = vector.broadcast %95 : vector<4x1xf32> to vector<4x256xf32>
    %97 = arith.mulf %92, %96 : vector<4x256xf32>
    %cst_54 = arith.constant 0.000000e+00 : f32
    %98 = vector.broadcast %cst_54 : f32 to vector<4x256xf32>
    %99 = arith.maximumf %97, %98 : vector<4x256xf32>
    %100 = vector.extract_strided_slice %99 {offsets = [0, 16], sizes = [4, 16], strides = [1, 1]} : vector<4x256xf32> to vector<4x16xf32>
    %101 = vector.extract_strided_slice %99 {offsets = [0, 224], sizes = [4, 16], strides = [1, 1]} : vector<4x256xf32> to vector<4x16xf32>
    %102 = tpu.concatenate %100, %99, %101 in 1 : vector<4x16xf32>, vector<4x256xf32>, vector<4x16xf32> -> vector<4x288xf32>
    %103 = vector.extract_strided_slice %102 {offsets = [0, 287], sizes = [4, 1], strides = [1, 1]} : vector<4x288xf32> to vector<4x1xf32>
    %104 = vector.extract_strided_slice %102 {offsets = [0, 0], sizes = [4, 287], strides = [1, 1]} : vector<4x288xf32> to vector<4x287xf32>
    %105 = tpu.concatenate %103, %104 in 1 : vector<4x1xf32>, vector<4x287xf32> -> vector<4x288xf32>
    %106 = vector.extract_strided_slice %102 {offsets = [0, 1], sizes = [4, 287], strides = [1, 1]} : vector<4x288xf32> to vector<4x287xf32>
    %107 = vector.extract_strided_slice %102 {offsets = [0, 0], sizes = [4, 1], strides = [1, 1]} : vector<4x288xf32> to vector<4x1xf32>
    %108 = tpu.concatenate %106, %107 in 1 : vector<4x287xf32>, vector<4x1xf32> -> vector<4x288xf32>
    %109 = arith.select %20, %108, %105 : vector<4x288xi1>, vector<4x288xf32>
    %110 = arith.select %22, %105, %108 : vector<4x288xi1>, vector<4x288xf32>
    %cst_55 = arith.constant 0.000000e+00 : f32
    %111 = vector.broadcast %cst_55 : f32 to vector<4x256xf32>
    %112 = vector.extract_strided_slice %109 {offsets = [0, 0], sizes = [4, 256], strides = [1, 1]} : vector<4x288xf32> to vector<4x256xf32>
    %c0_56 = arith.constant 0 : index
    %c0_57 = arith.constant 0 : index
    %c0_58 = arith.constant 0 : index
    %c0_59 = arith.constant 0 : index
    %113 = vector.load %arg3[%c0_56, %c0_57, %c0_58, %c0_59] : memref<3x3x4x4xf32, #tpu.memory_space<vmem>>, vector<1x1x4x4xf32>
    %114 = vector.shape_cast %113 : vector<1x1x4x4xf32> to vector<4x4xf32>
    %cst_60 = arith.constant dense<0.000000e+00> : vector<4x256xf32>
    %115 = tpu.matmul %114, %112, %cst_60 {dimension_numbers = #tpu.dot_dimension_numbers<[1], [0], [0], [1], [0, 0, 1, 1], [], []>} : vector<4x4xf32>, vector<4x256xf32>, vector<4x256xf32> -> vector<4x256xf32>
    %116 = arith.addf %111, %115 : vector<4x256xf32>
    %117 = vector.extract_strided_slice %102 {offsets = [0, 0], sizes = [4, 256], strides = [1, 1]} : vector<4x288xf32> to vector<4x256xf32>
    %c0_61 = arith.constant 0 : index
    %c1_62 = arith.constant 1 : index
    %c0_63 = arith.constant 0 : index
    %c0_64 = arith.constant 0 : index
    %118 = vector.load %arg3[%c0_61, %c1_62, %c0_63, %c0_64] : memref<3x3x4x4xf32, #tpu.memory_space<vmem>>, vector<1x1x4x4xf32>
    %119 = vector.shape_cast %118 : vector<1x1x4x4xf32> to vector<4x4xf32>
    %cst_65 = arith.constant dense<0.000000e+00> : vector<4x256xf32>
    %120 = tpu.matmul %119, %117, %cst_65 {dimension_numbers = #tpu.dot_dimension_numbers<[1], [0], [0], [1], [0, 0, 1, 1], [], []>} : vector<4x4xf32>, vector<4x256xf32>, vector<4x256xf32> -> vector<4x256xf32>
    %121 = arith.addf %116, %120 : vector<4x256xf32>
    %122 = vector.extract_strided_slice %110 {offsets = [0, 0], sizes = [4, 256], strides = [1, 1]} : vector<4x288xf32> to vector<4x256xf32>
    %c0_66 = arith.constant 0 : index
    %c2_67 = arith.constant 2 : index
    %c0_68 = arith.constant 0 : index
    %c0_69 = arith.constant 0 : index
    %123 = vector.load %arg3[%c0_66, %c2_67, %c0_68, %c0_69] : memref<3x3x4x4xf32, #tpu.memory_space<vmem>>, vector<1x1x4x4xf32>
    %124 = vector.shape_cast %123 : vector<1x1x4x4xf32> to vector<4x4xf32>
    %cst_70 = arith.constant dense<0.000000e+00> : vector<4x256xf32>
    %125 = tpu.matmul %124, %122, %cst_70 {dimension_numbers = #tpu.dot_dimension_numbers<[1], [0], [0], [1], [0, 0, 1, 1], [], []>} : vector<4x4xf32>, vector<4x256xf32>, vector<4x256xf32> -> vector<4x256xf32>
    %126 = arith.addf %121, %125 : vector<4x256xf32>
    %127 = vector.extract_strided_slice %109 {offsets = [0, 16], sizes = [4, 256], strides = [1, 1]} : vector<4x288xf32> to vector<4x256xf32>
    %c1_71 = arith.constant 1 : index
    %c0_72 = arith.constant 0 : index
    %c0_73 = arith.constant 0 : index
    %c0_74 = arith.constant 0 : index
    %128 = vector.load %arg3[%c1_71, %c0_72, %c0_73, %c0_74] : memref<3x3x4x4xf32, #tpu.memory_space<vmem>>, vector<1x1x4x4xf32>
    %129 = vector.shape_cast %128 : vector<1x1x4x4xf32> to vector<4x4xf32>
    %cst_75 = arith.constant dense<0.000000e+00> : vector<4x256xf32>
    %130 = tpu.matmul %129, %127, %cst_75 {dimension_numbers = #tpu.dot_dimension_numbers<[1], [0], [0], [1], [0, 0, 1, 1], [], []>} : vector<4x4xf32>, vector<4x256xf32>, vector<4x256xf32> -> vector<4x256xf32>
    %131 = arith.addf %126, %130 : vector<4x256xf32>
    %132 = vector.extract_strided_slice %102 {offsets = [0, 16], sizes = [4, 256], strides = [1, 1]} : vector<4x288xf32> to vector<4x256xf32>
    %c1_76 = arith.constant 1 : index
    %c1_77 = arith.constant 1 : index
    %c0_78 = arith.constant 0 : index
    %c0_79 = arith.constant 0 : index
    %133 = vector.load %arg3[%c1_76, %c1_77, %c0_78, %c0_79] : memref<3x3x4x4xf32, #tpu.memory_space<vmem>>, vector<1x1x4x4xf32>
    %134 = vector.shape_cast %133 : vector<1x1x4x4xf32> to vector<4x4xf32>
    %cst_80 = arith.constant dense<0.000000e+00> : vector<4x256xf32>
    %135 = tpu.matmul %134, %132, %cst_80 {dimension_numbers = #tpu.dot_dimension_numbers<[1], [0], [0], [1], [0, 0, 1, 1], [], []>} : vector<4x4xf32>, vector<4x256xf32>, vector<4x256xf32> -> vector<4x256xf32>
    %136 = arith.addf %131, %135 : vector<4x256xf32>
    %137 = vector.extract_strided_slice %110 {offsets = [0, 16], sizes = [4, 256], strides = [1, 1]} : vector<4x288xf32> to vector<4x256xf32>
    %c1_81 = arith.constant 1 : index
    %c2_82 = arith.constant 2 : index
    %c0_83 = arith.constant 0 : index
    %c0_84 = arith.constant 0 : index
    %138 = vector.load %arg3[%c1_81, %c2_82, %c0_83, %c0_84] : memref<3x3x4x4xf32, #tpu.memory_space<vmem>>, vector<1x1x4x4xf32>
    %139 = vector.shape_cast %138 : vector<1x1x4x4xf32> to vector<4x4xf32>
    %cst_85 = arith.constant dense<0.000000e+00> : vector<4x256xf32>
    %140 = tpu.matmul %139, %137, %cst_85 {dimension_numbers = #tpu.dot_dimension_numbers<[1], [0], [0], [1], [0, 0, 1, 1], [], []>} : vector<4x4xf32>, vector<4x256xf32>, vector<4x256xf32> -> vector<4x256xf32>
    %141 = arith.addf %136, %140 : vector<4x256xf32>
    %142 = vector.extract_strided_slice %109 {offsets = [0, 32], sizes = [4, 256], strides = [1, 1]} : vector<4x288xf32> to vector<4x256xf32>
    %c2_86 = arith.constant 2 : index
    %c0_87 = arith.constant 0 : index
    %c0_88 = arith.constant 0 : index
    %c0_89 = arith.constant 0 : index
    %143 = vector.load %arg3[%c2_86, %c0_87, %c0_88, %c0_89] : memref<3x3x4x4xf32, #tpu.memory_space<vmem>>, vector<1x1x4x4xf32>
    %144 = vector.shape_cast %143 : vector<1x1x4x4xf32> to vector<4x4xf32>
    %cst_90 = arith.constant dense<0.000000e+00> : vector<4x256xf32>
    %145 = tpu.matmul %144, %142, %cst_90 {dimension_numbers = #tpu.dot_dimension_numbers<[1], [0], [0], [1], [0, 0, 1, 1], [], []>} : vector<4x4xf32>, vector<4x256xf32>, vector<4x256xf32> -> vector<4x256xf32>
    %146 = arith.addf %141, %145 : vector<4x256xf32>
    %147 = vector.extract_strided_slice %102 {offsets = [0, 32], sizes = [4, 256], strides = [1, 1]} : vector<4x288xf32> to vector<4x256xf32>
    %c2_91 = arith.constant 2 : index
    %c1_92 = arith.constant 1 : index
    %c0_93 = arith.constant 0 : index
    %c0_94 = arith.constant 0 : index
    %148 = vector.load %arg3[%c2_91, %c1_92, %c0_93, %c0_94] : memref<3x3x4x4xf32, #tpu.memory_space<vmem>>, vector<1x1x4x4xf32>
    %149 = vector.shape_cast %148 : vector<1x1x4x4xf32> to vector<4x4xf32>
    %cst_95 = arith.constant dense<0.000000e+00> : vector<4x256xf32>
    %150 = tpu.matmul %149, %147, %cst_95 {dimension_numbers = #tpu.dot_dimension_numbers<[1], [0], [0], [1], [0, 0, 1, 1], [], []>} : vector<4x4xf32>, vector<4x256xf32>, vector<4x256xf32> -> vector<4x256xf32>
    %151 = arith.addf %146, %150 : vector<4x256xf32>
    %152 = vector.extract_strided_slice %110 {offsets = [0, 32], sizes = [4, 256], strides = [1, 1]} : vector<4x288xf32> to vector<4x256xf32>
    %c2_96 = arith.constant 2 : index
    %c2_97 = arith.constant 2 : index
    %c0_98 = arith.constant 0 : index
    %c0_99 = arith.constant 0 : index
    %153 = vector.load %arg3[%c2_96, %c2_97, %c0_98, %c0_99] : memref<3x3x4x4xf32, #tpu.memory_space<vmem>>, vector<1x1x4x4xf32>
    %154 = vector.shape_cast %153 : vector<1x1x4x4xf32> to vector<4x4xf32>
    %cst_100 = arith.constant dense<0.000000e+00> : vector<4x256xf32>
    %155 = tpu.matmul %154, %152, %cst_100 {dimension_numbers = #tpu.dot_dimension_numbers<[1], [0], [0], [1], [0, 0, 1, 1], [], []>} : vector<4x4xf32>, vector<4x256xf32>, vector<4x256xf32> -> vector<4x256xf32>
    %156 = arith.addf %151, %155 : vector<4x256xf32>
    %cst_101 = arith.constant dense<0.000000e+00> : vector<4xf32>
    %157 = vector.multi_reduction <add>, %156, %cst_101 [1] : vector<4x256xf32> to vector<4xf32>
    %158 = vector.shape_cast %157 : vector<4xf32> to vector<4x1xf32>
    %cst_102 = arith.constant 3.906250e-03 : f32
    %159 = vector.broadcast %cst_102 : f32 to vector<4x1xf32>
    %160 = arith.mulf %158, %159 : vector<4x1xf32>
    %161 = arith.mulf %156, %156 : vector<4x256xf32>
    %cst_103 = arith.constant dense<0.000000e+00> : vector<4xf32>
    %162 = vector.multi_reduction <add>, %161, %cst_103 [1] : vector<4x256xf32> to vector<4xf32>
    %163 = vector.shape_cast %162 : vector<4xf32> to vector<4x1xf32>
    %cst_104 = arith.constant 3.906250e-03 : f32
    %164 = vector.broadcast %cst_104 : f32 to vector<4x1xf32>
    %165 = arith.mulf %163, %164 : vector<4x1xf32>
    %166 = arith.mulf %160, %160 : vector<4x1xf32>
    %167 = arith.subf %165, %166 : vector<4x1xf32>
    %168 = vector.broadcast %160 : vector<4x1xf32> to vector<4x256xf32>
    %169 = arith.subf %156, %168 : vector<4x256xf32>
    %cst_105 = arith.constant 9.99999974E-6 : f32
    %170 = vector.broadcast %cst_105 : f32 to vector<4x1xf32>
    %171 = arith.addf %167, %170 : vector<4x1xf32>
    %172 = math.rsqrt %171 : vector<4x1xf32>
    %173 = vector.broadcast %172 : vector<4x1xf32> to vector<4x256xf32>
    %174 = arith.mulf %169, %173 : vector<4x256xf32>
    %175 = arith.addf %1, %174 : vector<4x256xf32>
    %c0_106 = arith.constant 0 : index
    %c0_107 = arith.constant 0 : index
    %c0_108 = arith.constant 0 : index
    %176 = vector.load %arg4[%c0_106, %c0_107, %c0_108] : memref<1x4x256xf32, #tpu.memory_space<vmem>>, vector<1x4x256xf32>
    %177 = vector.shape_cast %176 : vector<1x4x256xf32> to vector<4x256xf32>
    %178 = vector.shape_cast %175 : vector<4x256xf32> to vector<1x4x256xf32>
    tpu.vector_store %arg4[%c0_106, %c0_107, %c0_108], %178 {strides = array<i32>} : memref<1x4x256xf32, #tpu.memory_space<vmem>>, vector<1x4x256xf32>,
    return
  }
  func.func @transform_0(%arg0: i32) -> (i32, i32, i32) {
    %c0_i32 = arith.constant 0 : i32
    %c0_i32_0 = arith.constant 0 : i32
    %c0_i32_1 = arith.constant 0 : i32
    return %arg0, %c0_i32, %c0_i32_0 : i32, i32, i32
  }
  func.func @transform_1(%arg0: i32) -> (i32, i32, i32, i32) {
    %c0_i32 = arith.constant 0 : i32
    %c0_i32_0 = arith.constant 0 : i32
    %c0_i32_1 = arith.constant 0 : i32
    %c0_i32_2 = arith.constant 0 : i32
    %c0_i32_3 = arith.constant 0 : i32
    return %c0_i32, %c0_i32_0, %c0_i32_1, %c0_i32_2 : i32, i32, i32, i32
  }
  func.func @transform_2(%arg0: i32) -> (i32, i32, i32, i32) {
    %c0_i32 = arith.constant 0 : i32
    %c0_i32_0 = arith.constant 0 : i32
    %c0_i32_1 = arith.constant 0 : i32
    %c0_i32_2 = arith.constant 0 : i32
    %c0_i32_3 = arith.constant 0 : i32
    return %c0_i32, %c0_i32_0, %c0_i32_1, %c0_i32_2 : i32, i32, i32, i32
  }
  func.func @transform_3(%arg0: i32) -> (i32, i32, i32) {
    %c0_i32 = arith.constant 0 : i32
    %c0_i32_0 = arith.constant 0 : i32
    %c0_i32_1 = arith.constant 0 : i32
    return %arg0, %c0_i32, %c0_i32_0 : i32, i32, i32
  }
}

</mosaic_0001>

<llo_original>
// kernel: tpu_custom_call.1
$region0: #{tpu_custom_call.1}
  #allocation0 [shape = 'u32[]', space=smem, size = 0x4, offset = 0x4, fixed_abs, tag = 'smem constant byte address 0x4 - core index']
  #allocation1 [shape = 'u32[144,128]{1,0:T(1,128)}', space=vmem, size = 0x12000, scoped, tag = 'internal scratch']
  %s0 = inlined_call_operand.hbm [shape: f32[2,4,256], index: 0, kind: input, shape index: {}]
  %s1 = inlined_call_operand.hbm [shape: f32[3,3,4,4], index: 1, kind: input, shape index: {}]
  %s2 = inlined_call_operand.hbm [shape: f32[3,3,4,4], index: 2, kind: input, shape index: {}]
  %s3 = inlined_call_operand.hbm [shape: f32[2,4,256], index: 3, kind: output, shape index: {}]
  %s4 = sld [smem:[#allocation0]]
  $region57: #{tpu_custom_call.1} parent=0
    _
  %s6 = ssub.s32 1, %s4
  %s7 = scalar_select 0, %s6, %s4
  $region1: #{tpu_custom_call.1} parent=0
    #allocation2 [shape = 'u8[8192]{0}', space=vmem, size = 0x2000, scoped, tag = 'input window, operand 0']
    #allocation3 [shape = 's32[2]{0}', space=sflag, size = 0x8, scoped, tag = 'scoped memory for tpu_custom_call.1']
    #allocation4 [shape = 's32[2]{0}', space=sflag, size = 0x8, scoped, tag = 'scoped memory for tpu_custom_call.1']
    #allocation5 [shape = 'u8[18432]{0}', space=vmem, size = 0x4800, scoped, tag = 'input window, operand 1, single buffered']
    #allocation6 [shape = 's32[1]{0}', space=sflag, size = 0x4, scoped, tag = 'scoped memory for tpu_custom_call.1']
    #allocation7 [shape = 'u8[18432]{0}', space=vmem, size = 0x4800, scoped, tag = 'input window, operand 2, single buffered']
    #allocation8 [shape = 'u8[8192]{0}', space=vmem, size = 0x2000, scoped, tag = 'output window, operand 0']
    %8 = vsyncpa [#allocation3], 0
    %s9 = scalar_lea.sflag [#allocation3], 1
    %10 = vsyncpa %s9, 0
    %11 = vsyncpa [#allocation6], 0
    %12 = vsyncpa [#allocation4], 0
    %s13 = scalar_lea.sflag [#allocation4], 1
    %14 = vsyncpa %s13, 0
    loop: start=0, step=1, limit=4
    $region2: #{tpu_custom_call.1} parent=1 // loop_pre_header
      _
    $region3: #{tpu_custom_call.1} parent=1 // loop_header
      %s16 = sphi 0, %s20
      %p17 = scmp.ge.s32.totalorder %s16, 4
      %s26 = sphi 0, %s28
      %s29 = sphi 0, %s26
      %s30 = sphi 0, %s29
      %s46 = sphi 0, %s30
      %s50 = sphi 0, %s50
      %s52 = sphi 0, %s50
      %s53 = sphi 0, %s52
      %s67 = sphi 0, %s53
      %s71 = sphi 0, %s71
      %s73 = sphi 0, %s71
      %s74 = sphi 0, %s73
      %s88 = sphi 0, %s74
      %s94 = sphi 0, %s96
      %s97 = sphi 0, %s94
      %s98 = sphi 0, %s97
      %s114 = sphi 0, %s98
    $region4: #{tpu_custom_call.1} parent=1 // loop_header_branch
      %19 = sbr.rel (%p17) target = $region8
    $region5: #{tpu_custom_call.1} parent=1 // loop_body
      %s21 = ssub.s32 %s16, 1
      %s22 = ssub.s32 %s16, 2
      %s23 = sadd.s32 %s16, 1
      %s24 = ssub.s32 %s16, %s23
      %p25 = scmp.eq.s32.totalorder %s24, 0
      %s27 = sadd.s32 %s26, 1
      %s28 = scalar_select %p25, %s26, %s27
      %p31 = pneg %p25
      %p32 = scmp.eq.s32.totalorder %s16, 1
      %p33 = por %p31, %p32
      %p34 = scmp.ne.s32.totalorder %s26, %s29
      %p35 = scmp.eq.s32.totalorder %s16, 0
      %p36 = por %p34, %p35
      %p37 = scmp.ne.s32.totalorder %s26, %s29
      %p38 = scmp.eq.s32.totalorder %s21, 1
      %p39 = por %p37, %p38
      %p40 = scmp.ne.s32.totalorder %s29, %s30
      %p41 = scmp.eq.s32.totalorder %s21, 0
      %p42 = por %p40, %p41
      %p43 = scmp.ne.s32.totalorder %s29, %s30
      %p44 = scmp.eq.s32.totalorder %s22, 1
      %p45 = por %p43, %p44
      %p47 = scmp.ne.s32.totalorder %s30, %s46
      %p48 = scmp.eq.s32.totalorder %s22, 0
      %p49 = por %p47, %p48
      %s51 = sadd.s32 %s50, 1
      %p54 = scmp.eq.s32.totalorder %s16, 1
      %p55 = scmp.ne.s32.totalorder %s50, %s52
      %p56 = scmp.eq.s32.totalorder %s16, 0
      %p57 = por %p55, %p56
      %p58 = scmp.ne.s32.totalorder %s50, %s52
      %p59 = scmp.eq.s32.totalorder %s21, 1
      %p60 = por %p58, %p59
      %p61 = scmp.ne.s32.totalorder %s52, %s53
      %p62 = scmp.eq.s32.totalorder %s21, 0
      %p63 = por %p61, %p62
      %p64 = scmp.ne.s32.totalorder %s52, %s53
      %p65 = scmp.eq.s32.totalorder %s22, 1
      %p66 = por %p64, %p65
      %p68 = scmp.ne.s32.totalorder %s53, %s67
      %p69 = scmp.eq.s32.totalorder %s22, 0
      %p70 = por %p68, %p69
      %s72 = sadd.s32 %s71, 1
      %p75 = scmp.eq.s32.totalorder %s16, 1
      %p76 = scmp.ne.s32.totalorder %s71, %s73
      %p77 = scmp.eq.s32.totalorder %s16, 0
      %p78 = por %p76, %p77
      %p79 = scmp.ne.s32.totalorder %s71, %s73
      %p80 = scmp.eq.s32.totalorder %s21, 1
      %p81 = por %p79, %p80
      %p82 = scmp.ne.s32.totalorder %s73, %s74
      %p83 = scmp.eq.s32.totalorder %s21, 0
      %p84 = por %p82, %p83
      %p85 = scmp.ne.s32.totalorder %s73, %s74
      %p86 = scmp.eq.s32.totalorder %s22, 1
      %p87 = por %p85, %p86
      %p89 = scmp.ne.s32.totalorder %s74, %s88
      %p90 = scmp.eq.s32.totalorder %s22, 0
      %p91 = por %p89, %p90
      %s92 = ssub.s32 %s16, %s23
      %p93 = scmp.eq.s32.totalorder %s92, 0
      %s95 = sadd.s32 %s94, 1
      %s96 = scalar_select %p93, %s94, %s95
      %p99 = pneg %p93
      %p100 = scmp.eq.s32.totalorder %s16, 1
      %p101 = por %p99, %p100
      %p102 = scmp.ne.s32.totalorder %s94, %s97
      %p103 = scmp.eq.s32.totalorder %s16, 0
      %p104 = por %p102, %p103
      %p105 = scmp.ne.s32.totalorder %s94, %s97
      %p106 = scmp.eq.s32.totalorder %s21, 1
      %p107 = por %p105, %p106
      %p108 = scmp.ne.s32.totalorder %s97, %s98
      %p109 = scmp.eq.s32.totalorder %s21, 0
      %p110 = por %p108, %p109
      %p111 = scmp.ne.s32.totalorder %s97, %s98
      %p112 = scmp.eq.s32.totalorder %s22, 1
      %p113 = por %p111, %p112
      %p115 = scmp.ne.s32.totalorder %s98, %s114
      %p116 = scmp.eq.s32.totalorder %s22, 0
      %p117 = por %p115, %p116
      %p118 = scmp.le.s32.totalorder 1, %s16
      %p119 = scmp.lt.s32.totalorder %s16, 3
      %p120 = pnand %p118, %p119
      %p121 = pneg %p120
      // Predicated region
      $region9: #{tpu_custom_call.1} parent=5 // pred_check
        _
      $region10: #{tpu_custom_call.1} parent=5 // pred_check_branch
        %123 = sbr.rel (%p120) target = $region12
      $region11: #{tpu_custom_call.1} parent=5 // pred_region
        %s124 = ssub.s32 %s16, 1
        // Predicated region
        $region13: #{tpu_custom_call.1} parent=11 // pred_check
          %p125 = pneg %p63
        $region14: #{tpu_custom_call.1} parent=11 // pred_check_branch
          %127 = sbr.rel (%p125) target = $region16
        $region15: #{tpu_custom_call.1} parent=11 // pred_region
          %s129 = ssub.s32 576, 576
          %130 = vsyncadd [#allocation6], %s129
          %s131 = sshll.u32 [#allocation5], 4
          %s132 = int_to_ptr.vmem [resolvable:$true] %s131
          %137 = dma.hbm_to_vmem [thread:$0]  %s1, 576, %s132, [#allocation6], 64, 64, 4
        $region16: #{tpu_custom_call.1} parent=11 // pred_fallthru
          _
        // Predicated region
        $region17: #{tpu_custom_call.1} parent=11 // pred_check
          %p138 = pneg %p84
        $region18: #{tpu_custom_call.1} parent=11 // pred_check_branch
          %140 = sbr.rel (%p138) target = $region20
        $region19: #{tpu_custom_call.1} parent=11 // pred_region
          %s142 = ssub.s32 576, 576
          %143 = vsyncadd [#allocation6], %s142
          %s144 = sshll.u32 [#allocation7], 4
          %s145 = int_to_ptr.vmem [resolvable:$true] %s144
          %150 = dma.hbm_to_vmem [thread:$0]  %s2, 576, %s145, [#allocation6], 64, 64, 4
        $region20: #{tpu_custom_call.1} parent=11 // pred_fallthru
          _
      $region12: #{tpu_custom_call.1} parent=5 // pred_fallthru
        _
      %p151 = scmp.lt.s32.totalorder %s16, 2
      // Predicated region
      $region21: #{tpu_custom_call.1} parent=5 // pred_check
        %p152 = pneg %p151
      $region22: #{tpu_custom_call.1} parent=5 // pred_check_branch
        %154 = sbr.rel (%p152) target = $region24
      $region23: #{tpu_custom_call.1} parent=5 // pred_region
        // Predicated region
        $region25: #{tpu_custom_call.1} parent=23 // pred_check
          %p155 = pneg %p36
        $region26: #{tpu_custom_call.1} parent=23 // pred_check_branch
          %157 = sbr.rel (%p155) target = $region28
        $region27: #{tpu_custom_call.1} parent=23 // pred_region
          %s158 = sand.u32 %s26, 1
          %s159 = scalar_lea.sflag [#allocation3], %s158
          %s160 = sand.u32 %s26, 1
          %s161 = smul.addr %s160, 8
          %s162 = scalar_lea.vmem [#allocation2], %s161
          %s164 = ssub.s32 128, 128
          %165 = vsyncadd %s159, %s164
          %s166 = smul.addr %s16, 2
          %s167 = smul.addr %s166, 64
          %s168 = scalar_lea.hbm %s0, %s167
          %s170 = sshll.u32 %s162, 4
          %s171 = int_to_ptr.vmem [resolvable:$true] %s170
          %173 = dma.hbm_to_vmem [thread:$0]  %s168, 128, %s171, %s159
        $region28: #{tpu_custom_call.1} parent=23 // pred_fallthru
          _
      $region24: #{tpu_custom_call.1} parent=5 // pred_fallthru
        _
      %p174 = scmp.le.s32.totalorder 1, %s16
      %p175 = scmp.lt.s32.totalorder %s16, 3
      %p176 = pnand %p174, %p175
      %p177 = pneg %p176
      // Predicated region
      $region29: #{tpu_custom_call.1} parent=5 // pred_check
        _
      $region30: #{tpu_custom_call.1} parent=5 // pred_check_branch
        %179 = sbr.rel (%p176) target = $region32
      $region31: #{tpu_custom_call.1} parent=5 // pred_region
        %s180 = ssub.s32 %s16, 1
        %s181 = sand.u32 %s29, 1
        %s182 = scalar_lea.sflag [#allocation3], %s181
        %s183 = sand.u32 %s29, 1
        %s184 = smul.addr %s183, 8
        %s185 = scalar_lea.vmem [#allocation2], %s184
        // Predicated region
        $region33: #{tpu_custom_call.1} parent=31 // pred_check
          %p186 = pneg %p42
        $region34: #{tpu_custom_call.1} parent=31 // pred_check_branch
          %188 = sbr.rel (%p186) target = $region36
        $region35: #{tpu_custom_call.1} parent=31 // pred_region
          %189 = dma.done %s182, 128
        $region36: #{tpu_custom_call.1} parent=31 // pred_fallthru
          _
        // Predicated region
        $region37: #{tpu_custom_call.1} parent=31 // pred_check
          %p190 = pneg %p63
        $region38: #{tpu_custom_call.1} parent=31 // pred_check_branch
          %192 = sbr.rel (%p190) target = $region40
        $region39: #{tpu_custom_call.1} parent=31 // pred_region
          %193 = dma.done [#allocation6], 576
        $region40: #{tpu_custom_call.1} parent=31 // pred_fallthru
          _
        // Predicated region
        $region41: #{tpu_custom_call.1} parent=31 // pred_check
          %p194 = pneg %p84
        $region42: #{tpu_custom_call.1} parent=31 // pred_check_branch
          %196 = sbr.rel (%p194) target = $region44
        $region43: #{tpu_custom_call.1} parent=31 // pred_region
          %197 = dma.done [#allocation6], 576
        $region44: #{tpu_custom_call.1} parent=31 // pred_fallthru
          _
        %s198 = sand.u32 %s29, 1
        %s199 = scalar_lea.sflag [#allocation3], %s198
        %s200 = sand.u32 %s29, 1
        %s201 = smul.addr %s200, 8
        %s202 = scalar_lea.vmem [#allocation2], %s201
        %p203 = pneg %p42
        %p204 = pneg %p39
        %p205 = pneg %p63
        %p206 = pneg %p60
        %p207 = pneg %p84
        %p208 = pneg %p81
        %p209 = pneg %p110
        %p210 = pneg %p107
        %s211 = sand.u32 %s97, 1
        %s212 = scalar_lea.sflag [#allocation4], %s211
        %s213 = sand.u32 %s97, 1
        %s214 = smul.addr %s213, 8
        %s215 = scalar_lea.vmem [#allocation8], %s214
        %v216 = vld [vmem:[%s185] sm:$0xff]
        %v217 = vlaneseq
        %v218 = vand.u32 %v217, 127
        %v219 = vadd.s32 %v218, 128
        %v220 = vadd.s32 %v218, 256
        %vm221 = vcmp.lt.s32.totalorder %v218, 0
        %v222 = vsub.s32 0, %v218
        %v223 = vsel %vm221, %v222, %v218
        %v224 = vshrl.u32 %v223, 4
        %v225 = vand.u32 %v223, 15
        %v226 = vsub.s32 0, %v225
        %v227 = vsel %vm221, %v226, %v225
        %vm228 = vcmp.lt.s32.totalorder %v219, 0
        %v229 = vsub.s32 0, %v219
        %v230 = vsel %vm228, %v229, %v219
        %v231 = vshrl.u32 %v230, 4
        %v232 = vand.u32 %v230, 15
        %v233 = vsub.s32 0, %v232
        %v234 = vsel %vm228, %v233, %v232
        %vm235 = vcmp.lt.s32.totalorder %v220, 0
        %v236 = vsub.s32 0, %v220
        %v237 = vsel %vm235, %v236, %v220
        %v238 = vshrl.u32 %v237, 4
        %v239 = vand.u32 %v237, 15
        %v240 = vsub.s32 0, %v239
        %v241 = vsel %vm235, %v240, %v239
        %vm242 = vcmp.ne.s32.totalorder %v227, 0
        %vm243 = vcmp.ne.s32.totalorder %v234, 0
        %vm244 = vcmp.ne.s32.totalorder %v241, 0
        %vm245 = vcmp.lt.s32.totalorder %v227, 0
        %vm246 = vcmp.lt.s32.totalorder %v234, 0
        %vm247 = vcmp.lt.s32.totalorder %v241, 0
        %vm248 = vmand %vm245, %vm242
        %vm249 = vmand %vm246, %vm243
        %vm250 = vmand %vm247, %vm244
        %v251 = vadd.s32 %v227, 16
        %v252 = vadd.s32 %v234, 16
        %v253 = vadd.s32 %v241, 16
        %v254 = vsel %vm248, %v251, %v227
        %v255 = vsel %vm249, %v252, %v234
        %v256 = vsel %vm250, %v253, %v241
        %vm257 = vcmp.eq.s32.totalorder %v254, 0
        %vm258 = vcmp.eq.s32.totalorder %v255, 0
        %vm259 = vcmp.eq.s32.totalorder %v256, 0
        %vm260 = vcmp.eq.s32.totalorder %v254, 15
        %vm261 = vcmp.eq.s32.totalorder %v255, 15
        %vm262 = vcmp.eq.s32.totalorder %v256, 15
        %264 = vrot.lane.b32.xlu0 %v216, 112
        %v265 = vpop.permute.xlu0 %264
        %v267 = vcombine.high %v216, %v216
        %268 = vrot.lane.b32.xlu0 %v216, 16
        %v269 = vpop.permute.xlu0 %268
        %270 = vrot.lane.b32.xlu0 %v267, 16
        %v271 = vpop.permute.xlu0 %270
        %vm272 = vcmask 130048
        %v273 = vsel %vm272, %v269, %v271
        %276 = vrot.lane.b32.xlu0 %v267, 48
        %v277 = vpop.permute.xlu0 %276
        %v279 = vsel %vm272, %v265, %v269
        %v280 = vsel %vm272, %v271, %v277
        %282 = vrot.lane.b32.xlu0 %v280, 97
        %v283 = vpop.permute.xlu0 %282
        %286 = vrot.lane.b32.xlu0 %v279, 1
        %v287 = vpop.permute.xlu0 %286
        %288 = vrot.lane.b32.xlu0 %v273, 1
        %v289 = vpop.permute.xlu0 %288
        %290 = vrot.lane.b32.xlu0 %v280, 1
        %v291 = vpop.permute.xlu0 %290
        %vm292 = vcmask 7168
        %v293 = vsel %vm292, %v287, %v289
        %v294 = vsel %vm292, %v289, %v291
        %v298 = vsel %vm292, %v283, %v287
        %299 = vrot.lane.b32.xlu0 %v279, 127
        %v300 = vpop.permute.xlu0 %299
        %301 = vrot.lane.b32.xlu0 %v273, 127
        %v302 = vpop.permute.xlu0 %301
        %303 = vrot.lane.b32.xlu0 %v280, 127
        %v304 = vpop.permute.xlu0 %303
        %vm305 = vcmask 1039360
        %v306 = vsel %vm305, %v300, %v302
        %v307 = vsel %vm305, %v302, %v304
        %311 = vrot.lane.b32.xlu0 %v279, 31
        %v312 = vpop.permute.xlu0 %311
        %vm314 = vcmask 252928
        %v315 = vsel %vm314, %v304, %v312
        %v316 = vsel %vm257, %v306, %v298
        %v317 = vsel %vm258, %v307, %v293
        %v318 = vsel %vm259, %v315, %v294
        %v319 = vsel %vm260, %v298, %v306
        %v320 = vsel %vm261, %v293, %v307
        %v321 = vsel %vm262, %v294, %v315
        %v322 = vld [vmem:[#allocation5] sm:$0xf]
        %s323 = scalar_lea.vmem [#allocation5], 4
        %v324 = vld [vmem:[%s323] sm:$0xf]
        %vm325 = vcmask 31744
        %v327 = vsel %vm325, %v324, 0
        %vm329 = vcmask 1043456
        %v330 = vsel %vm329, %v279, 0
        %v332 = vsel %vm329, %v273, 0
        %334 = vmatprep.subr.mxu0 %v332
        %335 = vmatpush1.msra.mxu0 %v330
        %336 = vmatprep.subr.mxu0 0.0
        %337 = vmatpush1.msra.mxu0 0.0
        %338 = vmatprep.subr.mxu0 0.0
        %339 = vmatpush1.msra.mxu0 0.0
        %340 = vmatprep.subr.mxu0 0.0
        %341 = vmatpush1.msra.mxu0 0.0
        %342 = vmatprep.subr.mxu0 0.0
        %343 = vmatpush1.msra.mxu0 0.0
        %344 = vmatprep.subr.mxu0 0.0
        %345 = vmatpush1.msra.mxu0 0.0
        %346 = vmatprep.subr.mxu0 0.0
        %347 = vmatpush1.msra.mxu0 0.0
        %348 = vmatprep.subr.mxu0 0.0
        %349 = vmatpush1.msra.mxu0 0.0
        %350 = vmatprep.subr.mxu0 0.0
        %351 = vmatpush1.msra.mxu0 0.0
        %352 = vmatprep.subr.mxu0 0.0
        %353 = vmatpush1.msra.mxu0 0.0
        %354 = vmatprep.subr.mxu0 0.0
        %355 = vmatpush1.msra.mxu0 0.0
        %356 = vmatprep.subr.mxu0 0.0
        %357 = vmatpush1.msra.mxu0 0.0
        %358 = vmatprep.subr.mxu0 0.0
        %359 = vmatpush1.msra.mxu0 0.0
        %360 = vmatprep.subr.mxu0 0.0
        %361 = vmatpush1.msra.mxu0 0.0
        %362 = vmatprep.subr.mxu0 0.0
        %363 = vmatpush1.msra.mxu0 0.0
        %364 = vmatprep.subr.mxu0 0.0
        %365 = vmatpush1.msra.mxu0 0.0
        %366 = vmatprep.subr.mxu0 0.0
        %367 = vmatpush1.msra.mxu0 0.0
        %368 = vmatprep.subr.mxu0 0.0
        %369 = vmatpush1.msra.mxu0 0.0
        %370 = vmatprep.subr.mxu0 0.0
        %371 = vmatpush1.msra.mxu0 0.0
        %372 = vmatprep.subr.mxu0 0.0
        %373 = vmatpush1.msra.mxu0 0.0
        %374 = vmatprep.subr.mxu0 0.0
        %375 = vmatpush1.msra.mxu0 0.0
        %376 = vmatprep.subr.mxu0 0.0
        %377 = vmatpush1.msra.mxu0 0.0
        %378 = vmatprep.subr.mxu0 0.0
        %379 = vmatpush1.msra.mxu0 0.0
        %380 = vmatprep.subr.mxu0 0.0
        %381 = vmatpush1.msra.mxu0 0.0
        %382 = vmatprep.subr.mxu0 0.0
        %383 = vmatpush1.msra.mxu0 0.0
        %384 = vmatprep.subr.mxu0 0.0
        %385 = vmatpush1.msra.mxu0 0.0
        %386 = vmatprep.subr.mxu0 0.0
        %387 = vmatpush1.msra.mxu0 0.0
        %388 = vmatprep.subr.mxu0 0.0
        %389 = vmatpush1.msra.mxu0 0.0
        %390 = vmatprep.subr.mxu0 0.0
        %391 = vmatpush1.msra.mxu0 0.0
        %392 = vmatprep.subr.mxu0 0.0
        %393 = vmatpush1.msra.mxu0 0.0
        %394 = vmatprep.subr.mxu0 0.0
        %395 = vmatpush1.msra.mxu0 0.0
        %396 = vmatprep.subr.mxu0 0.0
        %397 = vmatpush1.msra.mxu0 0.0
        %398 = vmatprep.mubr.f32.mxu0 0.0
        %399 = vmatmul.mubr.f32.gmra.mrb[0].mxu0 %v327
        %v400 = vpop.f32.mrb[0].mxu0
        %v401 = vadd.f32 0.0, %v400
        %v402 = vpop.f32.mrb[0].mxu0
        %v403 = vadd.f32 0.0, %v402
        %404 = vdwg.mxu0
        %v406 = vsel %vm325, %v322, 0
        %v409 = vsel %vm329, %v316, 0
        %v412 = vsel %vm329, %v317, 0
        %414 = vmatprep.subr.mxu0 %v412
        %415 = vmatpush1.msra.mxu0 %v409
        %416 = vmatprep.subr.mxu0 0.0
        %417 = vmatpush1.msra.mxu0 0.0
        %418 = vmatprep.subr.mxu0 0.0
        %419 = vmatpush1.msra.mxu0 0.0
        %420 = vmatprep.subr.mxu0 0.0
        %421 = vmatpush1.msra.mxu0 0.0
        %422 = vmatprep.subr.mxu0 0.0
        %423 = vmatpush1.msra.mxu0 0.0
        %424 = vmatprep.subr.mxu0 0.0
        %425 = vmatpush1.msra.mxu0 0.0
        %426 = vmatprep.subr.mxu0 0.0
        %427 = vmatpush1.msra.mxu0 0.0
        %428 = vmatprep.subr.mxu0 0.0
        %429 = vmatpush1.msra.mxu0 0.0
        %430 = vmatprep.subr.mxu0 0.0
        %431 = vmatpush1.msra.mxu0 0.0
        %432 = vmatprep.subr.mxu0 0.0
        %433 = vmatpush1.msra.mxu0 0.0
        %434 = vmatprep.subr.mxu0 0.0
        %435 = vmatpush1.msra.mxu0 0.0
        %436 = vmatprep.subr.mxu0 0.0
        %437 = vmatpush1.msra.mxu0 0.0
        %438 = vmatprep.subr.mxu0 0.0
        %439 = vmatpush1.msra.mxu0 0.0
        %440 = vmatprep.subr.mxu0 0.0
        %441 = vmatpush1.msra.mxu0 0.0
        %442 = vmatprep.subr.mxu0 0.0
        %443 = vmatpush1.msra.mxu0 0.0
        %444 = vmatprep.subr.mxu0 0.0
        %445 = vmatpush1.msra.mxu0 0.0
        %446 = vmatprep.subr.mxu0 0.0
        %447 = vmatpush1.msra.mxu0 0.0
        %448 = vmatprep.subr.mxu0 0.0
        %449 = vmatpush1.msra.mxu0 0.0
        %450 = vmatprep.subr.mxu0 0.0
        %451 = vmatpush1.msra.mxu0 0.0
        %452 = vmatprep.subr.mxu0 0.0
        %453 = vmatpush1.msra.mxu0 0.0
        %454 = vmatprep.subr.mxu0 0.0
        %455 = vmatpush1.msra.mxu0 0.0
        %456 = vmatprep.subr.mxu0 0.0
        %457 = vmatpush1.msra.mxu0 0.0
        %458 = vmatprep.subr.mxu0 0.0
        %459 = vmatpush1.msra.mxu0 0.0
        %460 = vmatprep.subr.mxu0 0.0
        %461 = vmatpush1.msra.mxu0 0.0
        %462 = vmatprep.subr.mxu0 0.0
        %463 = vmatpush1.msra.mxu0 0.0
        %464 = vmatprep.subr.mxu0 0.0
        %465 = vmatpush1.msra.mxu0 0.0
        %466 = vmatprep.subr.mxu0 0.0
        %467 = vmatpush1.msra.mxu0 0.0
        %468 = vmatprep.subr.mxu0 0.0
        %469 = vmatpush1.msra.mxu0 0.0
        %470 = vmatprep.subr.mxu0 0.0
        %471 = vmatpush1.msra.mxu0 0.0
        %472 = vmatprep.subr.mxu0 0.0
        %473 = vmatpush1.msra.mxu0 0.0
        %474 = vmatprep.subr.mxu0 0.0
        %475 = vmatpush1.msra.mxu0 0.0
        %476 = vmatprep.subr.mxu0 0.0
        %477 = vmatpush1.msra.mxu0 0.0
        %478 = vmatprep.mubr.f32.mxu0 0.0
        %479 = vmatmul.mubr.f32.gmra.mrb[0].mxu0 %v406
        %v480 = vpop.f32.mrb[0].mxu0
        %v481 = vadd.f32 %v401, %v480
        %v482 = vpop.f32.mrb[0].mxu0
        %v483 = vadd.f32 %v403, %v482
        %484 = vdwg.mxu0
        %s485 = scalar_lea.vmem [#allocation5], 8
        %v486 = vld [vmem:[%s485] sm:$0xf]
        %v488 = vsel %vm325, %v486, 0
        %v491 = vsel %vm329, %v319, 0
        %v494 = vsel %vm329, %v320, 0
        %496 = vmatprep.subr.mxu0 %v494
        %497 = vmatpush1.msra.mxu0 %v491
        %498 = vmatprep.subr.mxu0 0.0
        %499 = vmatpush1.msra.mxu0 0.0
        %500 = vmatprep.subr.mxu0 0.0
        %501 = vmatpush1.msra.mxu0 0.0
        %502 = vmatprep.subr.mxu0 0.0
        %503 = vmatpush1.msra.mxu0 0.0
        %504 = vmatprep.subr.mxu0 0.0
        %505 = vmatpush1.msra.mxu0 0.0
        %506 = vmatprep.subr.mxu0 0.0
        %507 = vmatpush1.msra.mxu0 0.0
        %508 = vmatprep.subr.mxu0 0.0
        %509 = vmatpush1.msra.mxu0 0.0
        %510 = vmatprep.subr.mxu0 0.0
        %511 = vmatpush1.msra.mxu0 0.0
        %512 = vmatprep.subr.mxu0 0.0
        %513 = vmatpush1.msra.mxu0 0.0
        %514 = vmatprep.subr.mxu0 0.0
        %515 = vmatpush1.msra.mxu0 0.0
        %516 = vmatprep.subr.mxu0 0.0
        %517 = vmatpush1.msra.mxu0 0.0
        %518 = vmatprep.subr.mxu0 0.0
        %519 = vmatpush1.msra.mxu0 0.0
        %520 = vmatprep.subr.mxu0 0.0
        %521 = vmatpush1.msra.mxu0 0.0
        %522 = vmatprep.subr.mxu0 0.0
        %523 = vmatpush1.msra.mxu0 0.0
        %524 = vmatprep.subr.mxu0 0.0
        %525 = vmatpush1.msra.mxu0 0.0
        %526 = vmatprep.subr.mxu0 0.0
        %527 = vmatpush1.msra.mxu0 0.0
        %528 = vmatprep.subr.mxu0 0.0
        %529 = vmatpush1.msra.mxu0 0.0
        %530 = vmatprep.subr.mxu0 0.0
        %531 = vmatpush1.msra.mxu0 0.0
        %532 = vmatprep.subr.mxu0 0.0
        %533 = vmatpush1.msra.mxu0 0.0
        %534 = vmatprep.subr.mxu0 0.0
        %535 = vmatpush1.msra.mxu0 0.0
        %536 = vmatprep.subr.mxu0 0.0
        %537 = vmatpush1.msra.mxu0 0.0
        %538 = vmatprep.subr.mxu0 0.0
        %539 = vmatpush1.msra.mxu0 0.0
        %540 = vmatprep.subr.mxu0 0.0
        %541 = vmatpush1.msra.mxu0 0.0
        %542 = vmatprep.subr.mxu0 0.0
        %543 = vmatpush1.msra.mxu0 0.0
        %544 = vmatprep.subr.mxu0 0.0
        %545 = vmatpush1.msra.mxu0 0.0
        %546 = vmatprep.subr.mxu0 0.0
        %547 = vmatpush1.msra.mxu0 0.0
        %548 = vmatprep.subr.mxu0 0.0
        %549 = vmatpush1.msra.mxu0 0.0
        %550 = vmatprep.subr.mxu0 0.0
        %551 = vmatpush1.msra.mxu0 0.0
        %552 = vmatprep.subr.mxu0 0.0
        %553 = vmatpush1.msra.mxu0 0.0
        %554 = vmatprep.subr.mxu0 0.0
        %555 = vmatpush1.msra.mxu0 0.0
        %556 = vmatprep.subr.mxu0 0.0
        %557 = vmatpush1.msra.mxu0 0.0
        %558 = vmatprep.subr.mxu0 0.0
        %559 = vmatpush1.msra.mxu0 0.0
        %560 = vmatprep.mubr.f32.mxu0 0.0
        %561 = vmatmul.mubr.f32.gmra.mrb[0].mxu0 %v488
        %v562 = vpop.f32.mrb[0].mxu0
        %v563 = vadd.f32 0.0, %v562
        %v564 = vpop.f32.mrb[0].mxu0
        %v565 = vadd.f32 0.0, %v564
        %566 = vdwg.mxu0
        %v567 = vadd.f32 %v481, %v563
        %v568 = vadd.f32 %v483, %v565
        %s569 = scalar_lea.vmem [#allocation5], 12
        %v570 = vld [vmem:[%s569] sm:$0xf]
        %572 = vrot.lane.b32.xlu0 %v316, 112
        %v573 = vpop.permute.xlu0 %572
        %574 = vrot.lane.b32.xlu0 %v317, 112
        %v575 = vpop.permute.xlu0 %574
        %576 = vrot.lane.b32.xlu0 %v318, 112
        %v577 = vpop.permute.xlu0 %576
        %vm578 = vcmask 916480
        %v579 = vsel %vm578, %v573, %v575
        %v580 = vsel %vm578, %v575, %v577
        %v582 = vsel %vm325, %v570, 0
        %v584 = vsel %vm329, %v579, 0
        %v586 = vsel %vm329, %v580, 0
        %588 = vmatprep.subr.mxu0 %v586
        %589 = vmatpush1.msra.mxu0 %v584
        %590 = vmatprep.subr.mxu0 0.0
        %591 = vmatpush1.msra.mxu0 0.0
        %592 = vmatprep.subr.mxu0 0.0
        %593 = vmatpush1.msra.mxu0 0.0
        %594 = vmatprep.subr.mxu0 0.0
        %595 = vmatpush1.msra.mxu0 0.0
        %596 = vmatprep.subr.mxu0 0.0
        %597 = vmatpush1.msra.mxu0 0.0
        %598 = vmatprep.subr.mxu0 0.0
        %599 = vmatpush1.msra.mxu0 0.0
        %600 = vmatprep.subr.mxu0 0.0
        %601 = vmatpush1.msra.mxu0 0.0
        %602 = vmatprep.subr.mxu0 0.0
        %603 = vmatpush1.msra.mxu0 0.0
        %604 = vmatprep.subr.mxu0 0.0
        %605 = vmatpush1.msra.mxu0 0.0
        %606 = vmatprep.subr.mxu0 0.0
        %607 = vmatpush1.msra.mxu0 0.0
        %608 = vmatprep.subr.mxu0 0.0
        %609 = vmatpush1.msra.mxu0 0.0
        %610 = vmatprep.subr.mxu0 0.0
        %611 = vmatpush1.msra.mxu0 0.0
        %612 = vmatprep.subr.mxu0 0.0
        %613 = vmatpush1.msra.mxu0 0.0
        %614 = vmatprep.subr.mxu0 0.0
        %615 = vmatpush1.msra.mxu0 0.0
        %616 = vmatprep.subr.mxu0 0.0
        %617 = vmatpush1.msra.mxu0 0.0
        %618 = vmatprep.subr.mxu0 0.0
        %619 = vmatpush1.msra.mxu0 0.0
        %620 = vmatprep.subr.mxu0 0.0
        %621 = vmatpush1.msra.mxu0 0.0
        %622 = vmatprep.subr.mxu0 0.0
        %623 = vmatpush1.msra.mxu0 0.0
        %624 = vmatprep.subr.mxu0 0.0
        %625 = vmatpush1.msra.mxu0 0.0
        %626 = vmatprep.subr.mxu0 0.0
        %627 = vmatpush1.msra.mxu0 0.0
        %628 = vmatprep.subr.mxu0 0.0
        %629 = vmatpush1.msra.mxu0 0.0
        %630 = vmatprep.subr.mxu0 0.0
        %631 = vmatpush1.msra.mxu0 0.0
        %632 = vmatprep.subr.mxu0 0.0
        %633 = vmatpush1.msra.mxu0 0.0
        %634 = vmatprep.subr.mxu0 0.0
        %635 = vmatpush1.msra.mxu0 0.0
        %636 = vmatprep.subr.mxu0 0.0
        %637 = vmatpush1.msra.mxu0 0.0
        %638 = vmatprep.subr.mxu0 0.0
        %639 = vmatpush1.msra.mxu0 0.0
        %640 = vmatprep.subr.mxu0 0.0
        %641 = vmatpush1.msra.mxu0 0.0
        %642 = vmatprep.subr.mxu0 0.0
        %643 = vmatpush1.msra.mxu0 0.0
        %644 = vmatprep.subr.mxu0 0.0
        %645 = vmatpush1.msra.mxu0 0.0
        %646 = vmatprep.subr.mxu0 0.0
        %647 = vmatpush1.msra.mxu0 0.0
        %648 = vmatprep.subr.mxu0 0.0
        %649 = vmatpush1.msra.mxu0 0.0
        %650 = vmatprep.subr.mxu0 0.0
        %651 = vmatpush1.msra.mxu0 0.0
        %652 = vmatprep.mubr.f32.mxu0 0.0
        %653 = vmatmul.mubr.f32.gmra.mrb[0].mxu0 %v582
        %v654 = vpop.f32.mrb[0].mxu0
        %v655 = vadd.f32 0.0, %v654
        %v656 = vpop.f32.mrb[0].mxu0
        %v657 = vadd.f32 0.0, %v656
        %658 = vdwg.mxu0
        %v659 = vadd.f32 %v567, %v655
        %v660 = vadd.f32 %v568, %v657
        %s661 = scalar_lea.vmem [#allocation5], 16
        %v662 = vld [vmem:[%s661] sm:$0xf]
        %663 = vrot.lane.b32.xlu0 %v279, 112
        %v664 = vpop.permute.xlu0 %663
        %665 = vrot.lane.b32.xlu0 %v273, 112
        %v666 = vpop.permute.xlu0 %665
        %667 = vrot.lane.b32.xlu0 %v280, 112
        %v668 = vpop.permute.xlu0 %667
        %v669 = vsel %vm578, %v664, %v666
        %v670 = vsel %vm578, %v666, %v668
        %v672 = vsel %vm325, %v662, 0
        %v674 = vsel %vm329, %v669, 0
        %v676 = vsel %vm329, %v670, 0
        %678 = vmatprep.subr.mxu0 %v676
        %679 = vmatpush1.msra.mxu0 %v674
        %680 = vmatprep.subr.mxu0 0.0
        %681 = vmatpush1.msra.mxu0 0.0
        %682 = vmatprep.subr.mxu0 0.0
        %683 = vmatpush1.msra.mxu0 0.0
        %684 = vmatprep.subr.mxu0 0.0
        %685 = vmatpush1.msra.mxu0 0.0
        %686 = vmatprep.subr.mxu0 0.0
        %687 = vmatpush1.msra.mxu0 0.0
        %688 = vmatprep.subr.mxu0 0.0
        %689 = vmatpush1.msra.mxu0 0.0
        %690 = vmatprep.subr.mxu0 0.0
        %691 = vmatpush1.msra.mxu0 0.0
        %692 = vmatprep.subr.mxu0 0.0
        %693 = vmatpush1.msra.mxu0 0.0
        %694 = vmatprep.subr.mxu0 0.0
        %695 = vmatpush1.msra.mxu0 0.0
        %696 = vmatprep.subr.mxu0 0.0
        %697 = vmatpush1.msra.mxu0 0.0
        %698 = vmatprep.subr.mxu0 0.0
        %699 = vmatpush1.msra.mxu0 0.0
        %700 = vmatprep.subr.mxu0 0.0
        %701 = vmatpush1.msra.mxu0 0.0
        %702 = vmatprep.subr.mxu0 0.0
        %703 = vmatpush1.msra.mxu0 0.0
        %704 = vmatprep.subr.mxu0 0.0
        %705 = vmatpush1.msra.mxu0 0.0
        %706 = vmatprep.subr.mxu0 0.0
        %707 = vmatpush1.msra.mxu0 0.0
        %708 = vmatprep.subr.mxu0 0.0
        %709 = vmatpush1.msra.mxu0 0.0
        %710 = vmatprep.subr.mxu0 0.0
        %711 = vmatpush1.msra.mxu0 0.0
        %712 = vmatprep.subr.mxu0 0.0
        %713 = vmatpush1.msra.mxu0 0.0
        %714 = vmatprep.subr.mxu0 0.0
        %715 = vmatpush1.msra.mxu0 0.0
        %716 = vmatprep.subr.mxu0 0.0
        %717 = vmatpush1.msra.mxu0 0.0
        %718 = vmatprep.subr.mxu0 0.0
        %719 = vmatpush1.msra.mxu0 0.0
        %720 = vmatprep.subr.mxu0 0.0
        %721 = vmatpush1.msra.mxu0 0.0
        %722 = vmatprep.subr.mxu0 0.0
        %723 = vmatpush1.msra.mxu0 0.0
        %724 = vmatprep.subr.mxu0 0.0
        %725 = vmatpush1.msra.mxu0 0.0
        %726 = vmatprep.subr.mxu0 0.0
        %727 = vmatpush1.msra.mxu0 0.0
        %728 = vmatprep.subr.mxu0 0.0
        %729 = vmatpush1.msra.mxu0 0.0
        %730 = vmatprep.subr.mxu0 0.0
        %731 = vmatpush1.msra.mxu0 0.0
        %732 = vmatprep.subr.mxu0 0.0
        %733 = vmatpush1.msra.mxu0 0.0
        %734 = vmatprep.subr.mxu0 0.0
        %735 = vmatpush1.msra.mxu0 0.0
        %736 = vmatprep.subr.mxu0 0.0
        %737 = vmatpush1.msra.mxu0 0.0
        %738 = vmatprep.subr.mxu0 0.0
        %739 = vmatpush1.msra.mxu0 0.0
        %740 = vmatprep.subr.mxu0 0.0
        %741 = vmatpush1.msra.mxu0 0.0
        %742 = vmatprep.mubr.f32.mxu0 0.0
        %743 = vmatmul.mubr.f32.gmra.mrb[0].mxu0 %v672
        %v744 = vpop.f32.mrb[0].mxu0
        %v745 = vadd.f32 0.0, %v744
        %v746 = vpop.f32.mrb[0].mxu0
        %v747 = vadd.f32 0.0, %v746
        %748 = vdwg.mxu0
        %v749 = vadd.f32 %v659, %v745
        %v750 = vadd.f32 %v660, %v747
        %s751 = scalar_lea.vmem [#allocation5], 20
        %v752 = vld [vmem:[%s751] sm:$0xf]
        %754 = vrot.lane.b32.xlu0 %v319, 112
        %v755 = vpop.permute.xlu0 %754
        %756 = vrot.lane.b32.xlu0 %v320, 112
        %v757 = vpop.permute.xlu0 %756
        %758 = vrot.lane.b32.xlu0 %v321, 112
        %v759 = vpop.permute.xlu0 %758
        %v760 = vsel %vm578, %v755, %v757
        %v761 = vsel %vm578, %v757, %v759
        %v763 = vsel %vm325, %v752, 0
        %v765 = vsel %vm329, %v760, 0
        %v767 = vsel %vm329, %v761, 0
        %769 = vmatprep.subr.mxu0 %v767
        %770 = vmatpush1.msra.mxu0 %v765
        %771 = vmatprep.subr.mxu0 0.0
        %772 = vmatpush1.msra.mxu0 0.0
        %773 = vmatprep.subr.mxu0 0.0
        %774 = vmatpush1.msra.mxu0 0.0
        %775 = vmatprep.subr.mxu0 0.0
        %776 = vmatpush1.msra.mxu0 0.0
        %777 = vmatprep.subr.mxu0 0.0
        %778 = vmatpush1.msra.mxu0 0.0
        %779 = vmatprep.subr.mxu0 0.0
        %780 = vmatpush1.msra.mxu0 0.0
        %781 = vmatprep.subr.mxu0 0.0
        %782 = vmatpush1.msra.mxu0 0.0
        %783 = vmatprep.subr.mxu0 0.0
        %784 = vmatpush1.msra.mxu0 0.0
        %785 = vmatprep.subr.mxu0 0.0
        %786 = vmatpush1.msra.mxu0 0.0
        %787 = vmatprep.subr.mxu0 0.0
        %788 = vmatpush1.msra.mxu0 0.0
        %789 = vmatprep.subr.mxu0 0.0
        %790 = vmatpush1.msra.mxu0 0.0
        %791 = vmatprep.subr.mxu0 0.0
        %792 = vmatpush1.msra.mxu0 0.0
        %793 = vmatprep.subr.mxu0 0.0
        %794 = vmatpush1.msra.mxu0 0.0
        %795 = vmatprep.subr.mxu0 0.0
        %796 = vmatpush1.msra.mxu0 0.0
        %797 = vmatprep.subr.mxu0 0.0
        %798 = vmatpush1.msra.mxu0 0.0
        %799 = vmatprep.subr.mxu0 0.0
        %800 = vmatpush1.msra.mxu0 0.0
        %801 = vmatprep.subr.mxu0 0.0
        %802 = vmatpush1.msra.mxu0 0.0
        %803 = vmatprep.subr.mxu0 0.0
        %804 = vmatpush1.msra.mxu0 0.0
        %805 = vmatprep.subr.mxu0 0.0
        %806 = vmatpush1.msra.mxu0 0.0
        %807 = vmatprep.subr.mxu0 0.0
        %808 = vmatpush1.msra.mxu0 0.0
        %809 = vmatprep.subr.mxu0 0.0
        %810 = vmatpush1.msra.mxu0 0.0
        %811 = vmatprep.subr.mxu0 0.0
        %812 = vmatpush1.msra.mxu0 0.0
        %813 = vmatprep.subr.mxu0 0.0
        %814 = vmatpush1.msra.mxu0 0.0
        %815 = vmatprep.subr.mxu0 0.0
        %816 = vmatpush1.msra.mxu0 0.0
        %817 = vmatprep.subr.mxu0 0.0
        %818 = vmatpush1.msra.mxu0 0.0
        %819 = vmatprep.subr.mxu0 0.0
        %820 = vmatpush1.msra.mxu0 0.0
        %821 = vmatprep.subr.mxu0 0.0
        %822 = vmatpush1.msra.mxu0 0.0
        %823 = vmatprep.subr.mxu0 0.0
        %824 = vmatpush1.msra.mxu0 0.0
        %825 = vmatprep.subr.mxu0 0.0
        %826 = vmatpush1.msra.mxu0 0.0
        %827 = vmatprep.subr.mxu0 0.0
        %828 = vmatpush1.msra.mxu0 0.0
        %829 = vmatprep.subr.mxu0 0.0
        %830 = vmatpush1.msra.mxu0 0.0
        %831 = vmatprep.subr.mxu0 0.0
        %832 = vmatpush1.msra.mxu0 0.0
        %833 = vmatprep.mubr.f32.mxu0 0.0
        %834 = vmatmul.mubr.f32.gmra.mrb[0].mxu0 %v763
        %v835 = vpop.f32.mrb[0].mxu0
        %v836 = vadd.f32 0.0, %v835
        %v837 = vpop.f32.mrb[0].mxu0
        %v838 = vadd.f32 0.0, %v837
        %839 = vdwg.mxu0
        %v840 = vadd.f32 %v749, %v836
        %v841 = vadd.f32 %v750, %v838
        %s842 = scalar_lea.vmem [#allocation5], 24
        %v843 = vld [vmem:[%s842] sm:$0xf]
        %844 = vrot.lane.b32.xlu0 %v316, 96
        %v845 = vpop.permute.xlu0 %844
        %846 = vrot.lane.b32.xlu0 %v317, 96
        %v847 = vpop.permute.xlu0 %846
        %848 = vrot.lane.b32.xlu0 %v318, 96
        %v849 = vpop.permute.xlu0 %848
        %vm850 = vcmask 785408
        %v851 = vsel %vm850, %v845, %v847
        %v852 = vsel %vm850, %v847, %v849
        %v854 = vsel %vm325, %v843, 0
        %v856 = vsel %vm329, %v851, 0
        %v858 = vsel %vm329, %v852, 0
        %860 = vmatprep.subr.mxu0 %v858
        %861 = vmatpush1.msra.mxu0 %v856
        %862 = vmatprep.subr.mxu0 0.0
        %863 = vmatpush1.msra.mxu0 0.0
        %864 = vmatprep.subr.mxu0 0.0
        %865 = vmatpush1.msra.mxu0 0.0
        %866 = vmatprep.subr.mxu0 0.0
        %867 = vmatpush1.msra.mxu0 0.0
        %868 = vmatprep.subr.mxu0 0.0
        %869 = vmatpush1.msra.mxu0 0.0
        %870 = vmatprep.subr.mxu0 0.0
        %871 = vmatpush1.msra.mxu0 0.0
        %872 = vmatprep.subr.mxu0 0.0
        %873 = vmatpush1.msra.mxu0 0.0
        %874 = vmatprep.subr.mxu0 0.0
        %875 = vmatpush1.msra.mxu0 0.0
        %876 = vmatprep.subr.mxu0 0.0
        %877 = vmatpush1.msra.mxu0 0.0
        %878 = vmatprep.subr.mxu0 0.0
        %879 = vmatpush1.msra.mxu0 0.0
        %880 = vmatprep.subr.mxu0 0.0
        %881 = vmatpush1.msra.mxu0 0.0
        %882 = vmatprep.subr.mxu0 0.0
        %883 = vmatpush1.msra.mxu0 0.0
        %884 = vmatprep.subr.mxu0 0.0
        %885 = vmatpush1.msra.mxu0 0.0
        %886 = vmatprep.subr.mxu0 0.0
        %887 = vmatpush1.msra.mxu0 0.0
        %888 = vmatprep.subr.mxu0 0.0
        %889 = vmatpush1.msra.mxu0 0.0
        %890 = vmatprep.subr.mxu0 0.0
        %891 = vmatpush1.msra.mxu0 0.0
        %892 = vmatprep.subr.mxu0 0.0
        %893 = vmatpush1.msra.mxu0 0.0
        %894 = vmatprep.subr.mxu0 0.0
        %895 = vmatpush1.msra.mxu0 0.0
        %896 = vmatprep.subr.mxu0 0.0
        %897 = vmatpush1.msra.mxu0 0.0
        %898 = vmatprep.subr.mxu0 0.0
        %899 = vmatpush1.msra.mxu0 0.0
        %900 = vmatprep.subr.mxu0 0.0
        %901 = vmatpush1.msra.mxu0 0.0
        %902 = vmatprep.subr.mxu0 0.0
        %903 = vmatpush1.msra.mxu0 0.0
        %904 = vmatprep.subr.mxu0 0.0
        %905 = vmatpush1.msra.mxu0 0.0
        %906 = vmatprep.subr.mxu0 0.0
        %907 = vmatpush1.msra.mxu0 0.0
        %908 = vmatprep.subr.mxu0 0.0
        %909 = vmatpush1.msra.mxu0 0.0
        %910 = vmatprep.subr.mxu0 0.0
        %911 = vmatpush1.msra.mxu0 0.0
        %912 = vmatprep.subr.mxu0 0.0
        %913 = vmatpush1.msra.mxu0 0.0
        %914 = vmatprep.subr.mxu0 0.0
        %915 = vmatpush1.msra.mxu0 0.0
        %916 = vmatprep.subr.mxu0 0.0
        %917 = vmatpush1.msra.mxu0 0.0
        %918 = vmatprep.subr.mxu0 0.0
        %919 = vmatpush1.msra.mxu0 0.0
        %920 = vmatprep.subr.mxu0 0.0
        %921 = vmatpush1.msra.mxu0 0.0
        %922 = vmatprep.subr.mxu0 0.0
        %923 = vmatpush1.msra.mxu0 0.0
        %924 = vmatprep.mubr.f32.mxu0 0.0
        %925 = vmatmul.mubr.f32.gmra.mrb[0].mxu0 %v854
        %v926 = vpop.f32.mrb[0].mxu0
        %v927 = vadd.f32 0.0, %v926
        %v928 = vpop.f32.mrb[0].mxu0
        %v929 = vadd.f32 0.0, %v928
        %930 = vdwg.mxu0
        %v931 = vadd.f32 %v840, %v927
        %v932 = vadd.f32 %v841, %v929
        %s933 = scalar_lea.vmem [#allocation5], 28
        %v934 = vld [vmem:[%s933] sm:$0xf]
        %935 = vrot.lane.b32.xlu0 %v279, 96
        %v936 = vpop.permute.xlu0 %935
        %937 = vrot.lane.b32.xlu0 %v273, 96
        %v938 = vpop.permute.xlu0 %937
        %939 = vrot.lane.b32.xlu0 %v280, 96
        %v940 = vpop.permute.xlu0 %939
        %v941 = vsel %vm850, %v936, %v938
        %v942 = vsel %vm850, %v938, %v940
        %v944 = vsel %vm325, %v934, 0
        %v946 = vsel %vm329, %v941, 0
        %v948 = vsel %vm329, %v942, 0
        %950 = vmatprep.subr.mxu0 %v948
        %951 = vmatpush1.msra.mxu0 %v946
        %952 = vmatprep.subr.mxu0 0.0
        %953 = vmatpush1.msra.mxu0 0.0
        %954 = vmatprep.subr.mxu0 0.0
        %955 = vmatpush1.msra.mxu0 0.0
        %956 = vmatprep.subr.mxu0 0.0
        %957 = vmatpush1.msra.mxu0 0.0
        %958 = vmatprep.subr.mxu0 0.0
        %959 = vmatpush1.msra.mxu0 0.0
        %960 = vmatprep.subr.mxu0 0.0
        %961 = vmatpush1.msra.mxu0 0.0
        %962 = vmatprep.subr.mxu0 0.0
        %963 = vmatpush1.msra.mxu0 0.0
        %964 = vmatprep.subr.mxu0 0.0
        %965 = vmatpush1.msra.mxu0 0.0
        %966 = vmatprep.subr.mxu0 0.0
        %967 = vmatpush1.msra.mxu0 0.0
        %968 = vmatprep.subr.mxu0 0.0
        %969 = vmatpush1.msra.mxu0 0.0
        %970 = vmatprep.subr.mxu0 0.0
        %971 = vmatpush1.msra.mxu0 0.0
        %972 = vmatprep.subr.mxu0 0.0
        %973 = vmatpush1.msra.mxu0 0.0
        %974 = vmatprep.subr.mxu0 0.0
        %975 = vmatpush1.msra.mxu0 0.0
        %976 = vmatprep.subr.mxu0 0.0
        %977 = vmatpush1.msra.mxu0 0.0
        %978 = vmatprep.subr.mxu0 0.0
        %979 = vmatpush1.msra.mxu0 0.0
        %980 = vmatprep.subr.mxu0 0.0
        %981 = vmatpush1.msra.mxu0 0.0
        %982 = vmatprep.subr.mxu0 0.0
        %983 = vmatpush1.msra.mxu0 0.0
        %984 = vmatprep.subr.mxu0 0.0
        %985 = vmatpush1.msra.mxu0 0.0
        %986 = vmatprep.subr.mxu0 0.0
        %987 = vmatpush1.msra.mxu0 0.0
        %988 = vmatprep.subr.mxu0 0.0
        %989 = vmatpush1.msra.mxu0 0.0
        %990 = vmatprep.subr.mxu0 0.0
        %991 = vmatpush1.msra.mxu0 0.0
        %992 = vmatprep.subr.mxu0 0.0
        %993 = vmatpush1.msra.mxu0 0.0
        %994 = vmatprep.subr.mxu0 0.0
        %995 = vmatpush1.msra.mxu0 0.0
        %996 = vmatprep.subr.mxu0 0.0
        %997 = vmatpush1.msra.mxu0 0.0
        %998 = vmatprep.subr.mxu0 0.0
        %999 = vmatpush1.msra.mxu0 0.0
        %1000 = vmatprep.subr.mxu0 0.0
        %1001 = vmatpush1.msra.mxu0 0.0
        %1002 = vmatprep.subr.mxu0 0.0
        %1003 = vmatpush1.msra.mxu0 0.0
        %1004 = vmatprep.subr.mxu0 0.0
        %1005 = vmatpush1.msra.mxu0 0.0
        %1006 = vmatprep.subr.mxu0 0.0
        %1007 = vmatpush1.msra.mxu0 0.0
        %1008 = vmatprep.subr.mxu0 0.0
        %1009 = vmatpush1.msra.mxu0 0.0
        %1010 = vmatprep.subr.mxu0 0.0
        %1011 = vmatpush1.msra.mxu0 0.0
        %1012 = vmatprep.subr.mxu0 0.0
        %1013 = vmatpush1.msra.mxu0 0.0
        %1014 = vmatprep.mubr.f32.mxu0 0.0
        %1015 = vmatmul.mubr.f32.gmra.mrb[0].mxu0 %v944
        %v1016 = vpop.f32.mrb[0].mxu0
        %v1017 = vadd.f32 0.0, %v1016
        %v1018 = vpop.f32.mrb[0].mxu0
        %v1019 = vadd.f32 0.0, %v1018
        %1020 = vdwg.mxu0
        %v1021 = vadd.f32 %v931, %v1017
        %v1022 = vadd.f32 %v932, %v1019
        %s1023 = scalar_lea.vmem [#allocation5], 32
        %v1024 = vld [vmem:[%s1023] sm:$0xf]
        %1025 = vrot.lane.b32.xlu0 %v319, 96
        %v1026 = vpop.permute.xlu0 %1025
        %1027 = vrot.lane.b32.xlu0 %v320, 96
        %v1028 = vpop.permute.xlu0 %1027
        %1029 = vrot.lane.b32.xlu0 %v321, 96
        %v1030 = vpop.permute.xlu0 %1029
        %v1031 = vsel %vm850, %v1026, %v1028
        %v1032 = vsel %vm850, %v1028, %v1030
        %v1034 = vsel %vm325, %v1024, 0
        %v1036 = vsel %vm329, %v1031, 0
        %v1038 = vsel %vm329, %v1032, 0
        %1040 = vmatprep.subr.mxu0 %v1038
        %1041 = vmatpush1.msra.mxu0 %v1036
        %1042 = vmatprep.subr.mxu0 0.0
        %1043 = vmatpush1.msra.mxu0 0.0
        %1044 = vmatprep.subr.mxu0 0.0
        %1045 = vmatpush1.msra.mxu0 0.0
        %1046 = vmatprep.subr.mxu0 0.0
        %1047 = vmatpush1.msra.mxu0 0.0
        %1048 = vmatprep.subr.mxu0 0.0
        %1049 = vmatpush1.msra.mxu0 0.0
        %1050 = vmatprep.subr.mxu0 0.0
        %1051 = vmatpush1.msra.mxu0 0.0
        %1052 = vmatprep.subr.mxu0 0.0
        %1053 = vmatpush1.msra.mxu0 0.0
        %1054 = vmatprep.subr.mxu0 0.0
        %1055 = vmatpush1.msra.mxu0 0.0
        %1056 = vmatprep.subr.mxu0 0.0
        %1057 = vmatpush1.msra.mxu0 0.0
        %1058 = vmatprep.subr.mxu0 0.0
        %1059 = vmatpush1.msra.mxu0 0.0
        %1060 = vmatprep.subr.mxu0 0.0
        %1061 = vmatpush1.msra.mxu0 0.0
        %1062 = vmatprep.subr.mxu0 0.0
        %1063 = vmatpush1.msra.mxu0 0.0
        %1064 = vmatprep.subr.mxu0 0.0
        %1065 = vmatpush1.msra.mxu0 0.0
        %1066 = vmatprep.subr.mxu0 0.0
        %1067 = vmatpush1.msra.mxu0 0.0
        %1068 = vmatprep.subr.mxu0 0.0
        %1069 = vmatpush1.msra.mxu0 0.0
        %1070 = vmatprep.subr.mxu0 0.0
        %1071 = vmatpush1.msra.mxu0 0.0
        %1072 = vmatprep.subr.mxu0 0.0
        %1073 = vmatpush1.msra.mxu0 0.0
        %1074 = vmatprep.subr.mxu0 0.0
        %1075 = vmatpush1.msra.mxu0 0.0
        %1076 = vmatprep.subr.mxu0 0.0
        %1077 = vmatpush1.msra.mxu0 0.0
        %1078 = vmatprep.subr.mxu0 0.0
        %1079 = vmatpush1.msra.mxu0 0.0
        %1080 = vmatprep.subr.mxu0 0.0
        %1081 = vmatpush1.msra.mxu0 0.0
        %1082 = vmatprep.subr.mxu0 0.0
        %1083 = vmatpush1.msra.mxu0 0.0
        %1084 = vmatprep.subr.mxu0 0.0
        %1085 = vmatpush1.msra.mxu0 0.0
        %1086 = vmatprep.subr.mxu0 0.0
        %1087 = vmatpush1.msra.mxu0 0.0
        %1088 = vmatprep.subr.mxu0 0.0
        %1089 = vmatpush1.msra.mxu0 0.0
        %1090 = vmatprep.subr.mxu0 0.0
        %1091 = vmatpush1.msra.mxu0 0.0
        %1092 = vmatprep.subr.mxu0 0.0
        %1093 = vmatpush1.msra.mxu0 0.0
        %1094 = vmatprep.subr.mxu0 0.0
        %1095 = vmatpush1.msra.mxu0 0.0
        %1096 = vmatprep.subr.mxu0 0.0
        %1097 = vmatpush1.msra.mxu0 0.0
        %1098 = vmatprep.subr.mxu0 0.0
        %1099 = vmatpush1.msra.mxu0 0.0
        %1100 = vmatprep.subr.mxu0 0.0
        %1101 = vmatpush1.msra.mxu0 0.0
        %1102 = vmatprep.subr.mxu0 0.0
        %1103 = vmatpush1.msra.mxu0 0.0
        %1104 = vmatprep.mubr.f32.mxu0 0.0
        %1105 = vmatmul.mubr.f32.gmra.mrb[0].mxu0 %v1034
        %v1106 = vpop.f32.mrb[0].mxu0
        %v1107 = vadd.f32 0.0, %v1106
        %v1108 = vpop.f32.mrb[0].mxu0
        %v1109 = vadd.f32 0.0, %v1108
        %1110 = vdwg.mxu0
        %v1111 = vadd.f32 %v1021, %v1107
        %v1112 = vadd.f32 %v1022, %v1109
        %v1113 = vsel %vm329, %v1111, 0.0
        %v1114 = vsel %vm329, %v1112, 0.0
        %v1115 = vadd.f32 %v1113, %v1114
        %1116 = vadd.xlane.f32.xlu0 %v1115
        %v1117 = vpop.xlane.xlu0 %1116
        %v1118 = vmul.f32 %v1117, 0.00390625
        %v1119 = vmul.f32 %v1111, %v1111
        %v1120 = vmul.f32 %v1112, %v1112
        %v1121 = vsel %vm329, %v1119, 0.0
        %v1122 = vsel %vm329, %v1120, 0.0
        %v1123 = vadd.f32 %v1121, %v1122
        %1124 = vadd.xlane.f32.xlu0 %v1123
        %v1125 = vpop.xlane.xlu0 %1124
        %v1126 = vmul.f32 %v1125, 0.00390625
        %v1127 = vmul.f32 %v1118, %v1118
        %v1128 = vsub.f32 %v1126, %v1127
        %v1129 = vsub.f32 %v1111, %v1118
        %v1130 = vsub.f32 %v1112, %v1118
        %v1131 = vadd.f32 %v1128, 1e-05
        %v1132 = vrsqrt.pop %v1131
        %v1133 = vmul.f32 %v1129, %v1132
        %v1134 = vmul.f32 %v1130, %v1132
        %v1135 = vmax.f32 %v1133, 0.0
        %v1136 = vmax.f32 %v1134, 0.0
        %1138 = vrot.lane.b32.xlu0 %v1135, 112
        %v1139 = vpop.permute.xlu0 %1138
        %1142 = vrot.lane.b32.xlu0 %v1135, 16
        %v1143 = vpop.permute.xlu0 %1142
        %1144 = vrot.lane.b32.xlu0 %v1136, 16
        %v1145 = vpop.permute.xlu0 %1144
        %v1146 = vsel %vm272, %v1143, %v1145
        %1149 = vrot.lane.b32.xlu0 %v1136, 48
        %v1150 = vpop.permute.xlu0 %1149
        %v1152 = vsel %vm272, %v1139, %v1143
        %v1153 = vsel %vm272, %v1145, %v1150
        %1155 = vrot.lane.b32.xlu0 %v1153, 97
        %v1156 = vpop.permute.xlu0 %1155
        %1159 = vrot.lane.b32.xlu0 %v1152, 1
        %v1160 = vpop.permute.xlu0 %1159
        %1161 = vrot.lane.b32.xlu0 %v1146, 1
        %v1162 = vpop.permute.xlu0 %1161
        %1163 = vrot.lane.b32.xlu0 %v1153, 1
        %v1164 = vpop.permute.xlu0 %1163
        %v1165 = vsel %vm292, %v1160, %v1162
        %v1166 = vsel %vm292, %v1162, %v1164
        %v1170 = vsel %vm292, %v1156, %v1160
        %1171 = vrot.lane.b32.xlu0 %v1152, 127
        %v1172 = vpop.permute.xlu0 %1171
        %1173 = vrot.lane.b32.xlu0 %v1146, 127
        %v1174 = vpop.permute.xlu0 %1173
        %1175 = vrot.lane.b32.xlu0 %v1153, 127
        %v1176 = vpop.permute.xlu0 %1175
        %v1177 = vsel %vm305, %v1172, %v1174
        %v1178 = vsel %vm305, %v1174, %v1176
        %1182 = vrot.lane.b32.xlu0 %v1152, 31
        %v1183 = vpop.permute.xlu0 %1182
        %v1185 = vsel %vm314, %v1176, %v1183
        %v1186 = vsel %vm257, %v1177, %v1170
        %v1187 = vsel %vm258, %v1178, %v1165
        %v1188 = vsel %vm259, %v1185, %v1166
        %v1189 = vsel %vm260, %v1170, %v1177
        %v1190 = vsel %vm261, %v1165, %v1178
        %v1191 = vsel %vm262, %v1166, %v1185
        %v1192 = vld [vmem:[#allocation7] sm:$0xf]
        %s1193 = scalar_lea.vmem [#allocation7], 4
        %v1194 = vld [vmem:[%s1193] sm:$0xf]
        %v1196 = vsel %vm325, %v1194, 0
        %v1198 = vsel %vm329, %v1152, 0
        %v1200 = vsel %vm329, %v1146, 0
        %1202 = vmatprep.subr.mxu0 %v1200
        %1203 = vmatpush1.msra.mxu0 %v1198
        %1204 = vmatprep.subr.mxu0 0.0
        %1205 = vmatpush1.msra.mxu0 0.0
        %1206 = vmatprep.subr.mxu0 0.0
        %1207 = vmatpush1.msra.mxu0 0.0
        %1208 = vmatprep.subr.mxu0 0.0
        %1209 = vmatpush1.msra.mxu0 0.0
        %1210 = vmatprep.subr.mxu0 0.0
        %1211 = vmatpush1.msra.mxu0 0.0
        %1212 = vmatprep.subr.mxu0 0.0
        %1213 = vmatpush1.msra.mxu0 0.0
        %1214 = vmatprep.subr.mxu0 0.0
        %1215 = vmatpush1.msra.mxu0 0.0
        %1216 = vmatprep.subr.mxu0 0.0
        %1217 = vmatpush1.msra.mxu0 0.0
        %1218 = vmatprep.subr.mxu0 0.0
        %1219 = vmatpush1.msra.mxu0 0.0
        %1220 = vmatprep.subr.mxu0 0.0
        %1221 = vmatpush1.msra.mxu0 0.0
        %1222 = vmatprep.subr.mxu0 0.0
        %1223 = vmatpush1.msra.mxu0 0.0
        %1224 = vmatprep.subr.mxu0 0.0
        %1225 = vmatpush1.msra.mxu0 0.0
        %1226 = vmatprep.subr.mxu0 0.0
        %1227 = vmatpush1.msra.mxu0 0.0
        %1228 = vmatprep.subr.mxu0 0.0
        %1229 = vmatpush1.msra.mxu0 0.0
        %1230 = vmatprep.subr.mxu0 0.0
        %1231 = vmatpush1.msra.mxu0 0.0
        %1232 = vmatprep.subr.mxu0 0.0
        %1233 = vmatpush1.msra.mxu0 0.0
        %1234 = vmatprep.subr.mxu0 0.0
        %1235 = vmatpush1.msra.mxu0 0.0
        %1236 = vmatprep.subr.mxu0 0.0
        %1237 = vmatpush1.msra.mxu0 0.0
        %1238 = vmatprep.subr.mxu0 0.0
        %1239 = vmatpush1.msra.mxu0 0.0
        %1240 = vmatprep.subr.mxu0 0.0
        %1241 = vmatpush1.msra.mxu0 0.0
        %1242 = vmatprep.subr.mxu0 0.0
        %1243 = vmatpush1.msra.mxu0 0.0
        %1244 = vmatprep.subr.mxu0 0.0
        %1245 = vmatpush1.msra.mxu0 0.0
        %1246 = vmatprep.subr.mxu0 0.0
        %1247 = vmatpush1.msra.mxu0 0.0
        %1248 = vmatprep.subr.mxu0 0.0
        %1249 = vmatpush1.msra.mxu0 0.0
        %1250 = vmatprep.subr.mxu0 0.0
        %1251 = vmatpush1.msra.mxu0 0.0
        %1252 = vmatprep.subr.mxu0 0.0
        %1253 = vmatpush1.msra.mxu0 0.0
        %1254 = vmatprep.subr.mxu0 0.0
        %1255 = vmatpush1.msra.mxu0 0.0
        %1256 = vmatprep.subr.mxu0 0.0
        %1257 = vmatpush1.msra.mxu0 0.0
        %1258 = vmatprep.subr.mxu0 0.0
        %1259 = vmatpush1.msra.mxu0 0.0
        %1260 = vmatprep.subr.mxu0 0.0
        %1261 = vmatpush1.msra.mxu0 0.0
        %1262 = vmatprep.subr.mxu0 0.0
        %1263 = vmatpush1.msra.mxu0 0.0
        %1264 = vmatprep.subr.mxu0 0.0
        %1265 = vmatpush1.msra.mxu0 0.0
        %1266 = vmatprep.mubr.f32.mxu0 0.0
        %1267 = vmatmul.mubr.f32.gmra.mrb[0].mxu0 %v1196
        %v1268 = vpop.f32.mrb[0].mxu0
        %v1269 = vadd.f32 0.0, %v1268
        %v1270 = vpop.f32.mrb[0].mxu0
        %v1271 = vadd.f32 0.0, %v1270
        %1272 = vdwg.mxu0
        %v1274 = vsel %vm325, %v1192, 0
        %v1277 = vsel %vm329, %v1186, 0
        %v1280 = vsel %vm329, %v1187, 0
        %1282 = vmatprep.subr.mxu0 %v1280
        %1283 = vmatpush1.msra.mxu0 %v1277
        %1284 = vmatprep.subr.mxu0 0.0
        %1285 = vmatpush1.msra.mxu0 0.0
        %1286 = vmatprep.subr.mxu0 0.0
        %1287 = vmatpush1.msra.mxu0 0.0
        %1288 = vmatprep.subr.mxu0 0.0
        %1289 = vmatpush1.msra.mxu0 0.0
        %1290 = vmatprep.subr.mxu0 0.0
        %1291 = vmatpush1.msra.mxu0 0.0
        %1292 = vmatprep.subr.mxu0 0.0
        %1293 = vmatpush1.msra.mxu0 0.0
        %1294 = vmatprep.subr.mxu0 0.0
        %1295 = vmatpush1.msra.mxu0 0.0
        %1296 = vmatprep.subr.mxu0 0.0
        %1297 = vmatpush1.msra.mxu0 0.0
        %1298 = vmatprep.subr.mxu0 0.0
        %1299 = vmatpush1.msra.mxu0 0.0
        %1300 = vmatprep.subr.mxu0 0.0
        %1301 = vmatpush1.msra.mxu0 0.0
        %1302 = vmatprep.subr.mxu0 0.0
        %1303 = vmatpush1.msra.mxu0 0.0
        %1304 = vmatprep.subr.mxu0 0.0
        %1305 = vmatpush1.msra.mxu0 0.0
        %1306 = vmatprep.subr.mxu0 0.0
        %1307 = vmatpush1.msra.mxu0 0.0
        %1308 = vmatprep.subr.mxu0 0.0
        %1309 = vmatpush1.msra.mxu0 0.0
        %1310 = vmatprep.subr.mxu0 0.0
        %1311 = vmatpush1.msra.mxu0 0.0
        %1312 = vmatprep.subr.mxu0 0.0
        %1313 = vmatpush1.msra.mxu0 0.0
        %1314 = vmatprep.subr.mxu0 0.0
        %1315 = vmatpush1.msra.mxu0 0.0
        %1316 = vmatprep.subr.mxu0 0.0
        %1317 = vmatpush1.msra.mxu0 0.0
        %1318 = vmatprep.subr.mxu0 0.0
        %1319 = vmatpush1.msra.mxu0 0.0
        %1320 = vmatprep.subr.mxu0 0.0
        %1321 = vmatpush1.msra.mxu0 0.0
        %1322 = vmatprep.subr.mxu0 0.0
        %1323 = vmatpush1.msra.mxu0 0.0
        %1324 = vmatprep.subr.mxu0 0.0
        %1325 = vmatpush1.msra.mxu0 0.0
        %1326 = vmatprep.subr.mxu0 0.0
        %1327 = vmatpush1.msra.mxu0 0.0
        %1328 = vmatprep.subr.mxu0 0.0
        %1329 = vmatpush1.msra.mxu0 0.0
        %1330 = vmatprep.subr.mxu0 0.0
        %1331 = vmatpush1.msra.mxu0 0.0
        %1332 = vmatprep.subr.mxu0 0.0
        %1333 = vmatpush1.msra.mxu0 0.0
        %1334 = vmatprep.subr.mxu0 0.0
        %1335 = vmatpush1.msra.mxu0 0.0
        %1336 = vmatprep.subr.mxu0 0.0
        %1337 = vmatpush1.msra.mxu0 0.0
        %1338 = vmatprep.subr.mxu0 0.0
        %1339 = vmatpush1.msra.mxu0 0.0
        %1340 = vmatprep.subr.mxu0 0.0
        %1341 = vmatpush1.msra.mxu0 0.0
        %1342 = vmatprep.subr.mxu0 0.0
        %1343 = vmatpush1.msra.mxu0 0.0
        %1344 = vmatprep.subr.mxu0 0.0
        %1345 = vmatpush1.msra.mxu0 0.0
        %1346 = vmatprep.mubr.f32.mxu0 0.0
        %1347 = vmatmul.mubr.f32.gmra.mrb[0].mxu0 %v1274
        %v1348 = vpop.f32.mrb[0].mxu0
        %v1349 = vadd.f32 %v1269, %v1348
        %v1350 = vpop.f32.mrb[0].mxu0
        %v1351 = vadd.f32 %v1271, %v1350
        %1352 = vdwg.mxu0
        %s1353 = scalar_lea.vmem [#allocation7], 8
        %v1354 = vld [vmem:[%s1353] sm:$0xf]
        %v1356 = vsel %vm325, %v1354, 0
        %v1359 = vsel %vm329, %v1189, 0
        %v1362 = vsel %vm329, %v1190, 0
        %1364 = vmatprep.subr.mxu0 %v1362
        %1365 = vmatpush1.msra.mxu0 %v1359
        %1366 = vmatprep.subr.mxu0 0.0
        %1367 = vmatpush1.msra.mxu0 0.0
        %1368 = vmatprep.subr.mxu0 0.0
        %1369 = vmatpush1.msra.mxu0 0.0
        %1370 = vmatprep.subr.mxu0 0.0
        %1371 = vmatpush1.msra.mxu0 0.0
        %1372 = vmatprep.subr.mxu0 0.0
        %1373 = vmatpush1.msra.mxu0 0.0
        %1374 = vmatprep.subr.mxu0 0.0
        %1375 = vmatpush1.msra.mxu0 0.0
        %1376 = vmatprep.subr.mxu0 0.0
        %1377 = vmatpush1.msra.mxu0 0.0
        %1378 = vmatprep.subr.mxu0 0.0
        %1379 = vmatpush1.msra.mxu0 0.0
        %1380 = vmatprep.subr.mxu0 0.0
        %1381 = vmatpush1.msra.mxu0 0.0
        %1382 = vmatprep.subr.mxu0 0.0
        %1383 = vmatpush1.msra.mxu0 0.0
        %1384 = vmatprep.subr.mxu0 0.0
        %1385 = vmatpush1.msra.mxu0 0.0
        %1386 = vmatprep.subr.mxu0 0.0
        %1387 = vmatpush1.msra.mxu0 0.0
        %1388 = vmatprep.subr.mxu0 0.0
        %1389 = vmatpush1.msra.mxu0 0.0
        %1390 = vmatprep.subr.mxu0 0.0
        %1391 = vmatpush1.msra.mxu0 0.0
        %1392 = vmatprep.subr.mxu0 0.0
        %1393 = vmatpush1.msra.mxu0 0.0
        %1394 = vmatprep.subr.mxu0 0.0
        %1395 = vmatpush1.msra.mxu0 0.0
        %1396 = vmatprep.subr.mxu0 0.0
        %1397 = vmatpush1.msra.mxu0 0.0
        %1398 = vmatprep.subr.mxu0 0.0
        %1399 = vmatpush1.msra.mxu0 0.0
        %1400 = vmatprep.subr.mxu0 0.0
        %1401 = vmatpush1.msra.mxu0 0.0
        %1402 = vmatprep.subr.mxu0 0.0
        %1403 = vmatpush1.msra.mxu0 0.0
        %1404 = vmatprep.subr.mxu0 0.0
        %1405 = vmatpush1.msra.mxu0 0.0
        %1406 = vmatprep.subr.mxu0 0.0
        %1407 = vmatpush1.msra.mxu0 0.0
        %1408 = vmatprep.subr.mxu0 0.0
        %1409 = vmatpush1.msra.mxu0 0.0
        %1410 = vmatprep.subr.mxu0 0.0
        %1411 = vmatpush1.msra.mxu0 0.0
        %1412 = vmatprep.subr.mxu0 0.0
        %1413 = vmatpush1.msra.mxu0 0.0
        %1414 = vmatprep.subr.mxu0 0.0
        %1415 = vmatpush1.msra.mxu0 0.0
        %1416 = vmatprep.subr.mxu0 0.0
        %1417 = vmatpush1.msra.mxu0 0.0
        %1418 = vmatprep.subr.mxu0 0.0
        %1419 = vmatpush1.msra.mxu0 0.0
        %1420 = vmatprep.subr.mxu0 0.0
        %1421 = vmatpush1.msra.mxu0 0.0
        %1422 = vmatprep.subr.mxu0 0.0
        %1423 = vmatpush1.msra.mxu0 0.0
        %1424 = vmatprep.subr.mxu0 0.0
        %1425 = vmatpush1.msra.mxu0 0.0
        %1426 = vmatprep.subr.mxu0 0.0
        %1427 = vmatpush1.msra.mxu0 0.0
        %1428 = vmatprep.mubr.f32.mxu0 0.0
        %1429 = vmatmul.mubr.f32.gmra.mrb[0].mxu0 %v1356
        %v1430 = vpop.f32.mrb[0].mxu0
        %v1431 = vadd.f32 0.0, %v1430
        %v1432 = vpop.f32.mrb[0].mxu0
        %v1433 = vadd.f32 0.0, %v1432
        %1434 = vdwg.mxu0
        %v1435 = vadd.f32 %v1349, %v1431
        %v1436 = vadd.f32 %v1351, %v1433
        %s1437 = scalar_lea.vmem [#allocation7], 12
        %v1438 = vld [vmem:[%s1437] sm:$0xf]
        %1440 = vrot.lane.b32.xlu0 %v1186, 112
        %v1441 = vpop.permute.xlu0 %1440
        %1442 = vrot.lane.b32.xlu0 %v1187, 112
        %v1443 = vpop.permute.xlu0 %1442
        %1444 = vrot.lane.b32.xlu0 %v1188, 112
        %v1445 = vpop.permute.xlu0 %1444
        %v1446 = vsel %vm578, %v1441, %v1443
        %v1447 = vsel %vm578, %v1443, %v1445
        %v1449 = vsel %vm325, %v1438, 0
        %v1451 = vsel %vm329, %v1446, 0
        %v1453 = vsel %vm329, %v1447, 0
        %1455 = vmatprep.subr.mxu0 %v1453
        %1456 = vmatpush1.msra.mxu0 %v1451
        %1457 = vmatprep.subr.mxu0 0.0
        %1458 = vmatpush1.msra.mxu0 0.0
        %1459 = vmatprep.subr.mxu0 0.0
        %1460 = vmatpush1.msra.mxu0 0.0
        %1461 = vmatprep.subr.mxu0 0.0
        %1462 = vmatpush1.msra.mxu0 0.0
        %1463 = vmatprep.subr.mxu0 0.0
        %1464 = vmatpush1.msra.mxu0 0.0
        %1465 = vmatprep.subr.mxu0 0.0
        %1466 = vmatpush1.msra.mxu0 0.0
        %1467 = vmatprep.subr.mxu0 0.0
        %1468 = vmatpush1.msra.mxu0 0.0
        %1469 = vmatprep.subr.mxu0 0.0
        %1470 = vmatpush1.msra.mxu0 0.0
        %1471 = vmatprep.subr.mxu0 0.0
        %1472 = vmatpush1.msra.mxu0 0.0
        %1473 = vmatprep.subr.mxu0 0.0
        %1474 = vmatpush1.msra.mxu0 0.0
        %1475 = vmatprep.subr.mxu0 0.0
        %1476 = vmatpush1.msra.mxu0 0.0
        %1477 = vmatprep.subr.mxu0 0.0
        %1478 = vmatpush1.msra.mxu0 0.0
        %1479 = vmatprep.subr.mxu0 0.0
        %1480 = vmatpush1.msra.mxu0 0.0
        %1481 = vmatprep.subr.mxu0 0.0
        %1482 = vmatpush1.msra.mxu0 0.0
        %1483 = vmatprep.subr.mxu0 0.0
        %1484 = vmatpush1.msra.mxu0 0.0
        %1485 = vmatprep.subr.mxu0 0.0
        %1486 = vmatpush1.msra.mxu0 0.0
        %1487 = vmatprep.subr.mxu0 0.0
        %1488 = vmatpush1.msra.mxu0 0.0
        %1489 = vmatprep.subr.mxu0 0.0
        %1490 = vmatpush1.msra.mxu0 0.0
        %1491 = vmatprep.subr.mxu0 0.0
        %1492 = vmatpush1.msra.mxu0 0.0
        %1493 = vmatprep.subr.mxu0 0.0
        %1494 = vmatpush1.msra.mxu0 0.0
        %1495 = vmatprep.subr.mxu0 0.0
        %1496 = vmatpush1.msra.mxu0 0.0
        %1497 = vmatprep.subr.mxu0 0.0
        %1498 = vmatpush1.msra.mxu0 0.0
        %1499 = vmatprep.subr.mxu0 0.0
        %1500 = vmatpush1.msra.mxu0 0.0
        %1501 = vmatprep.subr.mxu0 0.0
        %1502 = vmatpush1.msra.mxu0 0.0
        %1503 = vmatprep.subr.mxu0 0.0
        %1504 = vmatpush1.msra.mxu0 0.0
        %1505 = vmatprep.subr.mxu0 0.0
        %1506 = vmatpush1.msra.mxu0 0.0
        %1507 = vmatprep.subr.mxu0 0.0
        %1508 = vmatpush1.msra.mxu0 0.0
        %1509 = vmatprep.subr.mxu0 0.0
        %1510 = vmatpush1.msra.mxu0 0.0
        %1511 = vmatprep.subr.mxu0 0.0
        %1512 = vmatpush1.msra.mxu0 0.0
        %1513 = vmatprep.subr.mxu0 0.0
        %1514 = vmatpush1.msra.mxu0 0.0
        %1515 = vmatprep.subr.mxu0 0.0
        %1516 = vmatpush1.msra.mxu0 0.0
        %1517 = vmatprep.subr.mxu0 0.0
        %1518 = vmatpush1.msra.mxu0 0.0
        %1519 = vmatprep.mubr.f32.mxu0 0.0
        %1520 = vmatmul.mubr.f32.gmra.mrb[0].mxu0 %v1449
        %v1521 = vpop.f32.mrb[0].mxu0
        %v1522 = vadd.f32 0.0, %v1521
        %v1523 = vpop.f32.mrb[0].mxu0
        %v1524 = vadd.f32 0.0, %v1523
        %1525 = vdwg.mxu0
        %v1526 = vadd.f32 %v1435, %v1522
        %v1527 = vadd.f32 %v1436, %v1524
        %s1528 = scalar_lea.vmem [#allocation7], 16
        %v1529 = vld [vmem:[%s1528] sm:$0xf]
        %1530 = vrot.lane.b32.xlu0 %v1152, 112
        %v1531 = vpop.permute.xlu0 %1530
        %1532 = vrot.lane.b32.xlu0 %v1146, 112
        %v1533 = vpop.permute.xlu0 %1532
        %1534 = vrot.lane.b32.xlu0 %v1153, 112
        %v1535 = vpop.permute.xlu0 %1534
        %v1536 = vsel %vm578, %v1531, %v1533
        %v1537 = vsel %vm578, %v1533, %v1535
        %v1539 = vsel %vm325, %v1529, 0
        %v1541 = vsel %vm329, %v1536, 0
        %v1543 = vsel %vm329, %v1537, 0
        %1545 = vmatprep.subr.mxu0 %v1543
        %1546 = vmatpush1.msra.mxu0 %v1541
        %1547 = vmatprep.subr.mxu0 0.0
        %1548 = vmatpush1.msra.mxu0 0.0
        %1549 = vmatprep.subr.mxu0 0.0
        %1550 = vmatpush1.msra.mxu0 0.0
        %1551 = vmatprep.subr.mxu0 0.0
        %1552 = vmatpush1.msra.mxu0 0.0
        %1553 = vmatprep.subr.mxu0 0.0
        %1554 = vmatpush1.msra.mxu0 0.0
        %1555 = vmatprep.subr.mxu0 0.0
        %1556 = vmatpush1.msra.mxu0 0.0
        %1557 = vmatprep.subr.mxu0 0.0
        %1558 = vmatpush1.msra.mxu0 0.0
        %1559 = vmatprep.subr.mxu0 0.0
        %1560 = vmatpush1.msra.mxu0 0.0
        %1561 = vmatprep.subr.mxu0 0.0
        %1562 = vmatpush1.msra.mxu0 0.0
        %1563 = vmatprep.subr.mxu0 0.0
        %1564 = vmatpush1.msra.mxu0 0.0
        %1565 = vmatprep.subr.mxu0 0.0
        %1566 = vmatpush1.msra.mxu0 0.0
        %1567 = vmatprep.subr.mxu0 0.0
        %1568 = vmatpush1.msra.mxu0 0.0
        %1569 = vmatprep.subr.mxu0 0.0
        %1570 = vmatpush1.msra.mxu0 0.0
        %1571 = vmatprep.subr.mxu0 0.0
        %1572 = vmatpush1.msra.mxu0 0.0
        %1573 = vmatprep.subr.mxu0 0.0
        %1574 = vmatpush1.msra.mxu0 0.0
        %1575 = vmatprep.subr.mxu0 0.0
        %1576 = vmatpush1.msra.mxu0 0.0
        %1577 = vmatprep.subr.mxu0 0.0
        %1578 = vmatpush1.msra.mxu0 0.0
        %1579 = vmatprep.subr.mxu0 0.0
        %1580 = vmatpush1.msra.mxu0 0.0
        %1581 = vmatprep.subr.mxu0 0.0
        %1582 = vmatpush1.msra.mxu0 0.0
        %1583 = vmatprep.subr.mxu0 0.0
        %1584 = vmatpush1.msra.mxu0 0.0
        %1585 = vmatprep.subr.mxu0 0.0
        %1586 = vmatpush1.msra.mxu0 0.0
        %1587 = vmatprep.subr.mxu0 0.0
        %1588 = vmatpush1.msra.mxu0 0.0
        %1589 = vmatprep.subr.mxu0 0.0
        %1590 = vmatpush1.msra.mxu0 0.0
        %1591 = vmatprep.subr.mxu0 0.0
        %1592 = vmatpush1.msra.mxu0 0.0
        %1593 = vmatprep.subr.mxu0 0.0
        %1594 = vmatpush1.msra.mxu0 0.0
        %1595 = vmatprep.subr.mxu0 0.0
        %1596 = vmatpush1.msra.mxu0 0.0
        %1597 = vmatprep.subr.mxu0 0.0
        %1598 = vmatpush1.msra.mxu0 0.0
        %1599 = vmatprep.subr.mxu0 0.0
        %1600 = vmatpush1.msra.mxu0 0.0
        %1601 = vmatprep.subr.mxu0 0.0
        %1602 = vmatpush1.msra.mxu0 0.0
        %1603 = vmatprep.subr.mxu0 0.0
        %1604 = vmatpush1.msra.mxu0 0.0
        %1605 = vmatprep.subr.mxu0 0.0
        %1606 = vmatpush1.msra.mxu0 0.0
        %1607 = vmatprep.subr.mxu0 0.0
        %1608 = vmatpush1.msra.mxu0 0.0
        %1609 = vmatprep.mubr.f32.mxu0 0.0
        %1610 = vmatmul.mubr.f32.gmra.mrb[0].mxu0 %v1539
        %v1611 = vpop.f32.mrb[0].mxu0
        %v1612 = vadd.f32 0.0, %v1611
        %v1613 = vpop.f32.mrb[0].mxu0
        %v1614 = vadd.f32 0.0, %v1613
        %1615 = vdwg.mxu0
        %v1616 = vadd.f32 %v1526, %v1612
        %v1617 = vadd.f32 %v1527, %v1614
        %s1618 = scalar_lea.vmem [#allocation7], 20
        %v1619 = vld [vmem:[%s1618] sm:$0xf]
        %1621 = vrot.lane.b32.xlu0 %v1189, 112
        %v1622 = vpop.permute.xlu0 %1621
        %1623 = vrot.lane.b32.xlu0 %v1190, 112
        %v1624 = vpop.permute.xlu0 %1623
        %1625 = vrot.lane.b32.xlu0 %v1191, 112
        %v1626 = vpop.permute.xlu0 %1625
        %v1627 = vsel %vm578, %v1622, %v1624
        %v1628 = vsel %vm578, %v1624, %v1626
        %v1630 = vsel %vm325, %v1619, 0
        %v1632 = vsel %vm329, %v1627, 0
        %v1634 = vsel %vm329, %v1628, 0
        %1636 = vmatprep.subr.mxu0 %v1634
        %1637 = vmatpush1.msra.mxu0 %v1632
        %1638 = vmatprep.subr.mxu0 0.0
        %1639 = vmatpush1.msra.mxu0 0.0
        %1640 = vmatprep.subr.mxu0 0.0
        %1641 = vmatpush1.msra.mxu0 0.0
        %1642 = vmatprep.subr.mxu0 0.0
        %1643 = vmatpush1.msra.mxu0 0.0
        %1644 = vmatprep.subr.mxu0 0.0
        %1645 = vmatpush1.msra.mxu0 0.0
        %1646 = vmatprep.subr.mxu0 0.0
        %1647 = vmatpush1.msra.mxu0 0.0
        %1648 = vmatprep.subr.mxu0 0.0
        %1649 = vmatpush1.msra.mxu0 0.0
        %1650 = vmatprep.subr.mxu0 0.0
        %1651 = vmatpush1.msra.mxu0 0.0
        %1652 = vmatprep.subr.mxu0 0.0
        %1653 = vmatpush1.msra.mxu0 0.0
        %1654 = vmatprep.subr.mxu0 0.0
        %1655 = vmatpush1.msra.mxu0 0.0
        %1656 = vmatprep.subr.mxu0 0.0
        %1657 = vmatpush1.msra.mxu0 0.0
        %1658 = vmatprep.subr.mxu0 0.0
        %1659 = vmatpush1.msra.mxu0 0.0
        %1660 = vmatprep.subr.mxu0 0.0
        %1661 = vmatpush1.msra.mxu0 0.0
        %1662 = vmatprep.subr.mxu0 0.0
        %1663 = vmatpush1.msra.mxu0 0.0
        %1664 = vmatprep.subr.mxu0 0.0
        %1665 = vmatpush1.msra.mxu0 0.0
        %1666 = vmatprep.subr.mxu0 0.0
        %1667 = vmatpush1.msra.mxu0 0.0
        %1668 = vmatprep.subr.mxu0 0.0
        %1669 = vmatpush1.msra.mxu0 0.0
        %1670 = vmatprep.subr.mxu0 0.0
        %1671 = vmatpush1.msra.mxu0 0.0
        %1672 = vmatprep.subr.mxu0 0.0
        %1673 = vmatpush1.msra.mxu0 0.0
        %1674 = vmatprep.subr.mxu0 0.0
        %1675 = vmatpush1.msra.mxu0 0.0
        %1676 = vmatprep.subr.mxu0 0.0
        %1677 = vmatpush1.msra.mxu0 0.0
        %1678 = vmatprep.subr.mxu0 0.0
        %1679 = vmatpush1.msra.mxu0 0.0
        %1680 = vmatprep.subr.mxu0 0.0
        %1681 = vmatpush1.msra.mxu0 0.0
        %1682 = vmatprep.subr.mxu0 0.0
        %1683 = vmatpush1.msra.mxu0 0.0
        %1684 = vmatprep.subr.mxu0 0.0
        %1685 = vmatpush1.msra.mxu0 0.0
        %1686 = vmatprep.subr.mxu0 0.0
        %1687 = vmatpush1.msra.mxu0 0.0
        %1688 = vmatprep.subr.mxu0 0.0
        %1689 = vmatpush1.msra.mxu0 0.0
        %1690 = vmatprep.subr.mxu0 0.0
        %1691 = vmatpush1.msra.mxu0 0.0
        %1692 = vmatprep.subr.mxu0 0.0
        %1693 = vmatpush1.msra.mxu0 0.0
        %1694 = vmatprep.subr.mxu0 0.0
        %1695 = vmatpush1.msra.mxu0 0.0
        %1696 = vmatprep.subr.mxu0 0.0
        %1697 = vmatpush1.msra.mxu0 0.0
        %1698 = vmatprep.subr.mxu0 0.0
        %1699 = vmatpush1.msra.mxu0 0.0
        %1700 = vmatprep.mubr.f32.mxu0 0.0
        %1701 = vmatmul.mubr.f32.gmra.mrb[0].mxu0 %v1630
        %v1702 = vpop.f32.mrb[0].mxu0
        %v1703 = vadd.f32 0.0, %v1702
        %v1704 = vpop.f32.mrb[0].mxu0
        %v1705 = vadd.f32 0.0, %v1704
        %1706 = vdwg.mxu0
        %v1707 = vadd.f32 %v1616, %v1703
        %v1708 = vadd.f32 %v1617, %v1705
        %s1709 = scalar_lea.vmem [#allocation7], 24
        %v1710 = vld [vmem:[%s1709] sm:$0xf]
        %1711 = vrot.lane.b32.xlu0 %v1186, 96
        %v1712 = vpop.permute.xlu0 %1711
        %1713 = vrot.lane.b32.xlu0 %v1187, 96
        %v1714 = vpop.permute.xlu0 %1713
        %1715 = vrot.lane.b32.xlu0 %v1188, 96
        %v1716 = vpop.permute.xlu0 %1715
        %v1717 = vsel %vm850, %v1712, %v1714
        %v1718 = vsel %vm850, %v1714, %v1716
        %v1720 = vsel %vm325, %v1710, 0
        %v1722 = vsel %vm329, %v1717, 0
        %v1724 = vsel %vm329, %v1718, 0
        %1726 = vmatprep.subr.mxu0 %v1724
        %1727 = vmatpush1.msra.mxu0 %v1722
        %1728 = vmatprep.subr.mxu0 0.0
        %1729 = vmatpush1.msra.mxu0 0.0
        %1730 = vmatprep.subr.mxu0 0.0
        %1731 = vmatpush1.msra.mxu0 0.0
        %1732 = vmatprep.subr.mxu0 0.0
        %1733 = vmatpush1.msra.mxu0 0.0
        %1734 = vmatprep.subr.mxu0 0.0
        %1735 = vmatpush1.msra.mxu0 0.0
        %1736 = vmatprep.subr.mxu0 0.0
        %1737 = vmatpush1.msra.mxu0 0.0
        %1738 = vmatprep.subr.mxu0 0.0
        %1739 = vmatpush1.msra.mxu0 0.0
        %1740 = vmatprep.subr.mxu0 0.0
        %1741 = vmatpush1.msra.mxu0 0.0
        %1742 = vmatprep.subr.mxu0 0.0
        %1743 = vmatpush1.msra.mxu0 0.0
        %1744 = vmatprep.subr.mxu0 0.0
        %1745 = vmatpush1.msra.mxu0 0.0
        %1746 = vmatprep.subr.mxu0 0.0
        %1747 = vmatpush1.msra.mxu0 0.0
        %1748 = vmatprep.subr.mxu0 0.0
        %1749 = vmatpush1.msra.mxu0 0.0
        %1750 = vmatprep.subr.mxu0 0.0
        %1751 = vmatpush1.msra.mxu0 0.0
        %1752 = vmatprep.subr.mxu0 0.0
        %1753 = vmatpush1.msra.mxu0 0.0
        %1754 = vmatprep.subr.mxu0 0.0
        %1755 = vmatpush1.msra.mxu0 0.0
        %1756 = vmatprep.subr.mxu0 0.0
        %1757 = vmatpush1.msra.mxu0 0.0
        %1758 = vmatprep.subr.mxu0 0.0
        %1759 = vmatpush1.msra.mxu0 0.0
        %1760 = vmatprep.subr.mxu0 0.0
        %1761 = vmatpush1.msra.mxu0 0.0
        %1762 = vmatprep.subr.mxu0 0.0
        %1763 = vmatpush1.msra.mxu0 0.0
        %1764 = vmatprep.subr.mxu0 0.0
        %1765 = vmatpush1.msra.mxu0 0.0
        %1766 = vmatprep.subr.mxu0 0.0
        %1767 = vmatpush1.msra.mxu0 0.0
        %1768 = vmatprep.subr.mxu0 0.0
        %1769 = vmatpush1.msra.mxu0 0.0
        %1770 = vmatprep.subr.mxu0 0.0
        %1771 = vmatpush1.msra.mxu0 0.0
        %1772 = vmatprep.subr.mxu0 0.0
        %1773 = vmatpush1.msra.mxu0 0.0
        %1774 = vmatprep.subr.mxu0 0.0
        %1775 = vmatpush1.msra.mxu0 0.0
        %1776 = vmatprep.subr.mxu0 0.0
        %1777 = vmatpush1.msra.mxu0 0.0
        %1778 = vmatprep.subr.mxu0 0.0
        %1779 = vmatpush1.msra.mxu0 0.0
        %1780 = vmatprep.subr.mxu0 0.0
        %1781 = vmatpush1.msra.mxu0 0.0
        %1782 = vmatprep.subr.mxu0 0.0
        %1783 = vmatpush1.msra.mxu0 0.0
        %1784 = vmatprep.subr.mxu0 0.0
        %1785 = vmatpush1.msra.mxu0 0.0
        %1786 = vmatprep.subr.mxu0 0.0
        %1787 = vmatpush1.msra.mxu0 0.0
        %1788 = vmatprep.subr.mxu0 0.0
        %1789 = vmatpush1.msra.mxu0 0.0
        %1790 = vmatprep.mubr.f32.mxu0 0.0
        %1791 = vmatmul.mubr.f32.gmra.mrb[0].mxu0 %v1720
        %v1792 = vpop.f32.mrb[0].mxu0
        %v1793 = vadd.f32 0.0, %v1792
        %v1794 = vpop.f32.mrb[0].mxu0
        %v1795 = vadd.f32 0.0, %v1794
        %1796 = vdwg.mxu0
        %v1797 = vadd.f32 %v1707, %v1793
        %v1798 = vadd.f32 %v1708, %v1795
        %s1799 = scalar_lea.vmem [#allocation7], 28
        %v1800 = vld [vmem:[%s1799] sm:$0xf]
        %1801 = vrot.lane.b32.xlu0 %v1152, 96
        %v1802 = vpop.permute.xlu0 %1801
        %1803 = vrot.lane.b32.xlu0 %v1146, 96
        %v1804 = vpop.permute.xlu0 %1803
        %1805 = vrot.lane.b32.xlu0 %v1153, 96
        %v1806 = vpop.permute.xlu0 %1805
        %v1807 = vsel %vm850, %v1802, %v1804
        %v1808 = vsel %vm850, %v1804, %v1806
        %v1810 = vsel %vm325, %v1800, 0
        %v1812 = vsel %vm329, %v1807, 0
        %v1814 = vsel %vm329, %v1808, 0
        %1816 = vmatprep.subr.mxu0 %v1814
        %1817 = vmatpush1.msra.mxu0 %v1812
        %1818 = vmatprep.subr.mxu0 0.0
        %1819 = vmatpush1.msra.mxu0 0.0
        %1820 = vmatprep.subr.mxu0 0.0
        %1821 = vmatpush1.msra.mxu0 0.0
        %1822 = vmatprep.subr.mxu0 0.0
        %1823 = vmatpush1.msra.mxu0 0.0
        %1824 = vmatprep.subr.mxu0 0.0
        %1825 = vmatpush1.msra.mxu0 0.0
        %1826 = vmatprep.subr.mxu0 0.0
        %1827 = vmatpush1.msra.mxu0 0.0
        %1828 = vmatprep.subr.mxu0 0.0
        %1829 = vmatpush1.msra.mxu0 0.0
        %1830 = vmatprep.subr.mxu0 0.0
        %1831 = vmatpush1.msra.mxu0 0.0
        %1832 = vmatprep.subr.mxu0 0.0
        %1833 = vmatpush1.msra.mxu0 0.0
        %1834 = vmatprep.subr.mxu0 0.0
        %1835 = vmatpush1.msra.mxu0 0.0
        %1836 = vmatprep.subr.mxu0 0.0
        %1837 = vmatpush1.msra.mxu0 0.0
        %1838 = vmatprep.subr.mxu0 0.0
        %1839 = vmatpush1.msra.mxu0 0.0
        %1840 = vmatprep.subr.mxu0 0.0
        %1841 = vmatpush1.msra.mxu0 0.0
        %1842 = vmatprep.subr.mxu0 0.0
        %1843 = vmatpush1.msra.mxu0 0.0
        %1844 = vmatprep.subr.mxu0 0.0
        %1845 = vmatpush1.msra.mxu0 0.0
        %1846 = vmatprep.subr.mxu0 0.0
        %1847 = vmatpush1.msra.mxu0 0.0
        %1848 = vmatprep.subr.mxu0 0.0
        %1849 = vmatpush1.msra.mxu0 0.0
        %1850 = vmatprep.subr.mxu0 0.0
        %1851 = vmatpush1.msra.mxu0 0.0
        %1852 = vmatprep.subr.mxu0 0.0
        %1853 = vmatpush1.msra.mxu0 0.0
        %1854 = vmatprep.subr.mxu0 0.0
        %1855 = vmatpush1.msra.mxu0 0.0
        %1856 = vmatprep.subr.mxu0 0.0
        %1857 = vmatpush1.msra.mxu0 0.0
        %1858 = vmatprep.subr.mxu0 0.0
        %1859 = vmatpush1.msra.mxu0 0.0
        %1860 = vmatprep.subr.mxu0 0.0
        %1861 = vmatpush1.msra.mxu0 0.0
        %1862 = vmatprep.subr.mxu0 0.0
        %1863 = vmatpush1.msra.mxu0 0.0
        %1864 = vmatprep.subr.mxu0 0.0
        %1865 = vmatpush1.msra.mxu0 0.0
        %1866 = vmatprep.subr.mxu0 0.0
        %1867 = vmatpush1.msra.mxu0 0.0
        %1868 = vmatprep.subr.mxu0 0.0
        %1869 = vmatpush1.msra.mxu0 0.0
        %1870 = vmatprep.subr.mxu0 0.0
        %1871 = vmatpush1.msra.mxu0 0.0
        %1872 = vmatprep.subr.mxu0 0.0
        %1873 = vmatpush1.msra.mxu0 0.0
        %1874 = vmatprep.subr.mxu0 0.0
        %1875 = vmatpush1.msra.mxu0 0.0
        %1876 = vmatprep.subr.mxu0 0.0
        %1877 = vmatpush1.msra.mxu0 0.0
        %1878 = vmatprep.subr.mxu0 0.0
        %1879 = vmatpush1.msra.mxu0 0.0
        %1880 = vmatprep.mubr.f32.mxu0 0.0
        %1881 = vmatmul.mubr.f32.gmra.mrb[0].mxu0 %v1810
        %v1882 = vpop.f32.mrb[0].mxu0
        %v1883 = vadd.f32 0.0, %v1882
        %v1884 = vpop.f32.mrb[0].mxu0
        %v1885 = vadd.f32 0.0, %v1884
        %1886 = vdwg.mxu0
        %v1887 = vadd.f32 %v1797, %v1883
        %v1888 = vadd.f32 %v1798, %v1885
        %s1889 = scalar_lea.vmem [#allocation7], 32
        %v1890 = vld [vmem:[%s1889] sm:$0xf]
        %1891 = vrot.lane.b32.xlu0 %v1189, 96
        %v1892 = vpop.permute.xlu0 %1891
        %1893 = vrot.lane.b32.xlu0 %v1190, 96
        %v1894 = vpop.permute.xlu0 %1893
        %1895 = vrot.lane.b32.xlu0 %v1191, 96
        %v1896 = vpop.permute.xlu0 %1895
        %v1897 = vsel %vm850, %v1892, %v1894
        %v1898 = vsel %vm850, %v1894, %v1896
        %v1900 = vsel %vm325, %v1890, 0
        %v1902 = vsel %vm329, %v1897, 0
        %v1904 = vsel %vm329, %v1898, 0
        %1906 = vmatprep.subr.mxu0 %v1904
        %1907 = vmatpush1.msra.mxu0 %v1902
        %1908 = vmatprep.subr.mxu0 0.0
        %1909 = vmatpush1.msra.mxu0 0.0
        %1910 = vmatprep.subr.mxu0 0.0
        %1911 = vmatpush1.msra.mxu0 0.0
        %1912 = vmatprep.subr.mxu0 0.0
        %1913 = vmatpush1.msra.mxu0 0.0
        %1914 = vmatprep.subr.mxu0 0.0
        %1915 = vmatpush1.msra.mxu0 0.0
        %1916 = vmatprep.subr.mxu0 0.0
        %1917 = vmatpush1.msra.mxu0 0.0
        %1918 = vmatprep.subr.mxu0 0.0
        %1919 = vmatpush1.msra.mxu0 0.0
        %1920 = vmatprep.subr.mxu0 0.0
        %1921 = vmatpush1.msra.mxu0 0.0
        %1922 = vmatprep.subr.mxu0 0.0
        %1923 = vmatpush1.msra.mxu0 0.0
        %1924 = vmatprep.subr.mxu0 0.0
        %1925 = vmatpush1.msra.mxu0 0.0
        %1926 = vmatprep.subr.mxu0 0.0
        %1927 = vmatpush1.msra.mxu0 0.0
        %1928 = vmatprep.subr.mxu0 0.0
        %1929 = vmatpush1.msra.mxu0 0.0
        %1930 = vmatprep.subr.mxu0 0.0
        %1931 = vmatpush1.msra.mxu0 0.0
        %1932 = vmatprep.subr.mxu0 0.0
        %1933 = vmatpush1.msra.mxu0 0.0
        %1934 = vmatprep.subr.mxu0 0.0
        %1935 = vmatpush1.msra.mxu0 0.0
        %1936 = vmatprep.subr.mxu0 0.0
        %1937 = vmatpush1.msra.mxu0 0.0
        %1938 = vmatprep.subr.mxu0 0.0
        %1939 = vmatpush1.msra.mxu0 0.0
        %1940 = vmatprep.subr.mxu0 0.0
        %1941 = vmatpush1.msra.mxu0 0.0
        %1942 = vmatprep.subr.mxu0 0.0
        %1943 = vmatpush1.msra.mxu0 0.0
        %1944 = vmatprep.subr.mxu0 0.0
        %1945 = vmatpush1.msra.mxu0 0.0
        %1946 = vmatprep.subr.mxu0 0.0
        %1947 = vmatpush1.msra.mxu0 0.0
        %1948 = vmatprep.subr.mxu0 0.0
        %1949 = vmatpush1.msra.mxu0 0.0
        %1950 = vmatprep.subr.mxu0 0.0
        %1951 = vmatpush1.msra.mxu0 0.0
        %1952 = vmatprep.subr.mxu0 0.0
        %1953 = vmatpush1.msra.mxu0 0.0
        %1954 = vmatprep.subr.mxu0 0.0
        %1955 = vmatpush1.msra.mxu0 0.0
        %1956 = vmatprep.subr.mxu0 0.0
        %1957 = vmatpush1.msra.mxu0 0.0
        %1958 = vmatprep.subr.mxu0 0.0
        %1959 = vmatpush1.msra.mxu0 0.0
        %1960 = vmatprep.subr.mxu0 0.0
        %1961 = vmatpush1.msra.mxu0 0.0
        %1962 = vmatprep.subr.mxu0 0.0
        %1963 = vmatpush1.msra.mxu0 0.0
        %1964 = vmatprep.subr.mxu0 0.0
        %1965 = vmatpush1.msra.mxu0 0.0
        %1966 = vmatprep.subr.mxu0 0.0
        %1967 = vmatpush1.msra.mxu0 0.0
        %1968 = vmatprep.subr.mxu0 0.0
        %1969 = vmatpush1.msra.mxu0 0.0
        %1970 = vmatprep.mubr.f32.mxu0 0.0
        %1971 = vmatmul.mubr.f32.gmra.mrb[0].mxu0 %v1900
        %v1972 = vpop.f32.mrb[0].mxu0
        %v1973 = vadd.f32 0.0, %v1972
        %v1974 = vpop.f32.mrb[0].mxu0
        %v1975 = vadd.f32 0.0, %v1974
        %1976 = vdwg.mxu0
        %v1977 = vadd.f32 %v1887, %v1973
        %v1978 = vadd.f32 %v1888, %v1975
        %v1979 = vsel %vm329, %v1977, 0.0
        %v1980 = vsel %vm329, %v1978, 0.0
        %v1981 = vadd.f32 %v1979, %v1980
        %1982 = vadd.xlane.f32.xlu0 %v1981
        %v1983 = vpop.xlane.xlu0 %1982
        %v1984 = vmul.f32 %v1983, 0.00390625
        %v1985 = vmul.f32 %v1977, %v1977
        %v1986 = vmul.f32 %v1978, %v1978
        %v1987 = vsel %vm329, %v1985, 0.0
        %v1988 = vsel %vm329, %v1986, 0.0
        %v1989 = vadd.f32 %v1987, %v1988
        %1990 = vadd.xlane.f32.xlu0 %v1989
        %v1991 = vpop.xlane.xlu0 %1990
        %v1992 = vmul.f32 %v1991, 0.00390625
        %v1993 = vmul.f32 %v1984, %v1984
        %v1994 = vsub.f32 %v1992, %v1993
        %v1995 = vsub.f32 %v1977, %v1984
        %v1996 = vsub.f32 %v1978, %v1984
        %v1997 = vadd.f32 %v1994, 1e-05
        %v1998 = vrsqrt.pop %v1997
        %v1999 = vmul.f32 %v1995, %v1998
        %v2000 = vmul.f32 %v1996, %v1998
        %v2003 = vcombine.low %v1999, %v2000
        %v2005 = vadd.f32 %v216, %v2003
        %2006 = vst [vmem:[%s215] sm:$0xff] %v2005
        %s2007 = sand.u32 %s97, 1
        %s2008 = scalar_lea.sflag [#allocation4], %s2007
        %s2009 = sand.u32 %s97, 1
        %s2010 = smul.addr %s2009, 8
        %s2011 = scalar_lea.vmem [#allocation8], %s2010
        // Predicated region
        $region45: #{tpu_custom_call.1} parent=31 // pred_check
          %p2012 = pneg %p107
        $region46: #{tpu_custom_call.1} parent=31 // pred_check_branch
          %2014 = sbr.rel (%p2012) target = $region48
        $region47: #{tpu_custom_call.1} parent=31 // pred_region
          %s2016 = ssub.s32 128, 128
          %2017 = vsyncadd %s2008, %s2016
          %s2018 = smul.addr %s21, 2
          %s2019 = smul.addr %s2018, 64
          %s2020 = scalar_lea.hbm %s3, %s2019
          %s2022 = sshll.u32 %s2011, 4
          %s2023 = int_to_ptr.vmem [resolvable:$true] %s2022
          %2025 = dma.vmem_to_hbm [thread:$0]  %s2023, 128, %s2020, %s2008
        $region48: #{tpu_custom_call.1} parent=31 // pred_fallthru
          _
      $region32: #{tpu_custom_call.1} parent=5 // pred_fallthru
        _
      %p2026 = scmp.le.s32.totalorder 2, %s16
      // Predicated region
      $region49: #{tpu_custom_call.1} parent=5 // pred_check
        %p2027 = pneg %p2026
      $region50: #{tpu_custom_call.1} parent=5 // pred_check_branch
        %2029 = sbr.rel (%p2027) target = $region52
      $region51: #{tpu_custom_call.1} parent=5 // pred_region
        %s2030 = ssub.s32 %s16, 2
        // Predicated region
        $region53: #{tpu_custom_call.1} parent=51 // pred_check
          %p2031 = pneg %p113
        $region54: #{tpu_custom_call.1} parent=51 // pred_check_branch
          %2033 = sbr.rel (%p2031) target = $region56
        $region55: #{tpu_custom_call.1} parent=51 // pred_region
          %s2034 = sand.u32 %s98, 1
          %s2035 = scalar_lea.sflag [#allocation4], %s2034
          %s2036 = sand.u32 %s98, 1
          %s2037 = smul.addr %s2036, 8
          %s2038 = scalar_lea.vmem [#allocation8], %s2037
          %2039 = dma.done %s2035, 128
        $region56: #{tpu_custom_call.1} parent=51 // pred_fallthru
          _
      $region52: #{tpu_custom_call.1} parent=5 // pred_fallthru
        _
    $region6: #{tpu_custom_call.1} parent=1 // loop_footer
      %s20 = sadd.s32 1, %s16
    $region7: #{tpu_custom_call.1} parent=1 // loop_footer_branch
      %15 = sbr.rel target = $region3
    $region8: #{tpu_custom_call.1} parent=1 // loop_exit
      _
    %2040 = vsyncpa [#allocation3], 1
    %s2041 = scalar_lea.sflag [#allocation3], 1
    %2042 = vsyncpa %s2041, 1
    %2043 = vsyncpa [#allocation6], 1
    %2044 = vsyncpa [#allocation4], 1
    %s2045 = scalar_lea.sflag [#allocation4], 1
    %2046 = vsyncpa %s2045, 1

</llo_original>
